<compile_context>
chip_gen: v5e
topology: v5e:2x2
jax: 0.10.0
libtpu: 0.0.40
codegen_flags: <defaults>
</compile_context>

<pallas_src>
import jax
import jax.numpy as jnp
from jax.experimental import pallas as pl
from jax.experimental.pallas import tpu as pltpu

# Architecture constants (fixed by the PyTorch module: fc1 expects 320 = 20*4*4,
# which forces 28x28 single-channel inputs).
H_IN = 28      # input spatial size
K = 5          # conv kernel size
C1 = 10        # conv1 output channels
C2 = 20        # conv2 output channels
S1 = 12        # conv1 post-pool spatial size ((28-4)//2)
S2 = 4         # conv2 post-pool spatial size ((12-4)//2)
NFC1 = 50      # fc1 output features
NOUT = 10      # fc2 output features
LANE = 128     # TPU lane width
KC1 = (K + 1) * H_IN        # 168  conv1 contraction depth (6 shifted rows x 28 cols)
KC2 = (K + 1) * LANE        # 768  conv2 contraction depth (6 taps x 128 lanes)
KFC = S2 * LANE             # 512  fc1 contraction depth (4 pooled rows x 128 lanes)


def _round_up(n, m):
    return ((n + m - 1) // m) * m


# ----------------------------------------------------------------------------------
# Fused kernel: conv1+pool+relu -> conv2+pool+relu -> fc1+relu -> fc2
# ----------------------------------------------------------------------------------
def cnn_fused_kernel(y_ref, m1_ref, b1_ref, m2_ref, b2_ref,
                     w1_ref, fb1_ref, fw2_ref, fb2_ref, o_ref):
    f32 = jnp.float32
    bf16 = jnp.bfloat16
    Bk = o_ref.shape[0]                       # per-step batch block (multiple of 8)

    # ---- conv1 -> 2x2 max-pool -> bias -> relu ------------------------------------
    # y_ref[h1, b, d*28 + j] = x[b, 2*h1 + d, j]   (d = 0..5 shifted input rows)
    # m1 cols = pr*256 + pc*128 + c1*12 + wp  (pr/pc = output row/col parity).
    y = y_ref[...].reshape(S1 * Bk, KC1)                              # [12*Bk, 168]
    c1 = jnp.dot(y, m1_ref[...], preferred_element_type=f32)          # [12*Bk, 512]
    t1 = jnp.maximum(c1[:, :2 * LANE], c1[:, 2 * LANE:])              # pool row parity
    t1 = jnp.maximum(t1[:, :LANE], t1[:, LANE:])                      # pool col parity
    a1 = jnp.maximum(t1 + b1_ref[...], 0.0).astype(bf16)              # [12*Bk, 128]
    # a1 row = h1*Bk + b, col = c1*12 + wp (lanes 120..127 are zero).

    # ---- conv2 -> 2x2 max-pool -> bias -> relu ------------------------------------
    # Pack the 6 conv1-row taps each pooled conv2 row needs side-by-side (128-aligned).
    row_blocks = []
    for h2 in range(S2):
        row_blocks.append(jnp.concatenate(
            [a1[(2 * h2 + d) * Bk:(2 * h2 + d + 1) * Bk, :] for d in range(K + 1)],
            axis=1))                                                   # [Bk, 768]
    a1c = jnp.concatenate(row_blocks, axis=0)                          # [4*Bk, 768]
    c2 = jnp.dot(a1c, m2_ref[...], preferred_element_type=f32)         # [4*Bk, 512]
    t2 = jnp.maximum(c2[:, :2 * LANE], c2[:, 2 * LANE:])
    t2 = jnp.maximum(t2[:, :LANE], t2[:, LANE:])
    a2 = jnp.maximum(t2 + b2_ref[...], 0.0).astype(bf16)               # [4*Bk, 128]
    # a2 row = h2*Bk + b, col = c2*4 + wp2 (lanes 80..127 are zero).

    # ---- fc1 -> relu -> fc2 (dropouts are identity in eval mode) -------------------
    a2c = jnp.concatenate([a2[h2 * Bk:(h2 + 1) * Bk, :] for h2 in range(S2)],
                          axis=1)                                       # [Bk, 512]
    z1 = jnp.dot(a2c, w1_ref[...], preferred_element_type=f32) + fb1_ref[...]
    a3 = jnp.maximum(z1, 0.0).astype(bf16)                              # [Bk, 50]
    z2 = jnp.dot(a3, fw2_ref[...], preferred_element_type=f32) + fb2_ref[...]
    o_ref[...] = z2.astype(o_ref.dtype)                                 # [Bk, 10]


# ----------------------------------------------------------------------------------
# One-time host-side re-layout of the PyTorch parameters into lane-dense matrices.
# ----------------------------------------------------------------------------------
def prepare_weights(params):
    w1, b1, w2, b2, fw1, fb1, fw2, fb2 = [jnp.asarray(p, jnp.float32) for p in params]
    bf16 = jnp.bfloat16

    # conv1 banded weights, one big-K matrix (K = 168 = 6 shifted rows x 28 cols):
    #   m1[(ki+pr)*28 + (2*wp+pc+kj), pr*256 + pc*128 + c1*12 + wp] = w1[c1, 0, ki, kj]
    C1i, PR, PC, WP, KI, KJ = jnp.meshgrid(
        jnp.arange(C1), jnp.arange(2), jnp.arange(2), jnp.arange(S1),
        jnp.arange(K), jnp.arange(K), indexing="ij")
    rows = (KI + PR) * H_IN + (2 * WP + PC + KJ)
    cols = PR * 2 * LANE + PC * LANE + C1i * S1 + WP
    m1 = jnp.zeros((KC1, 4 * LANE), jnp.float32).at[rows, cols].set(w1[C1i, 0, KI, KJ])
    b1row = jnp.zeros((1, LANE), jnp.float32).at[0, :C1 * S1].set(jnp.repeat(b1, S1))

    # conv2 banded weights (K = 768 = 6 taps x 128 lanes):
    #   m2[(pr+ki)*128 + c1*12 + (2*wp2+pc+kj), pr*256 + pc*128 + c2*4 + wp2]
    #       = w2[c2, c1, ki, kj]
    C2i, C1i, PR, PC, WP2, KI, KJ = jnp.meshgrid(
        jnp.arange(C2), jnp.arange(C1), jnp.arange(2), jnp.arange(2),
        jnp.arange(S2), jnp.arange(K), jnp.arange(K), indexing="ij")
    rows = (PR + KI) * LANE + C1i * S1 + (2 * WP2 + PC + KJ)
    cols = PR * 2 * LANE + PC * LANE + C2i * S2 + WP2
    m2 = jnp.zeros((KC2, 4 * LANE), jnp.float32).at[rows, cols].set(
        w2[C2i, C1i, KI, KJ])
    b2row = jnp.zeros((1, LANE), jnp.float32).at[0, :C2 * S2].set(jnp.repeat(b2, S2))

    # fc1 with the PyTorch NCHW flatten (feature = c2*16 + h2*4 + w) folded in:
    #   w1cat[h2*128 + c2*4 + w, :] = fw1[c2*16 + h2*4 + w, :]
    w1cat = jnp.zeros((KFC, NFC1), jnp.float32)
    c2i = jnp.arange(C2)[:, None]
    wi = jnp.arange(S2)[None, :]
    for h2 in range(S2):
        src = (c2i * (S2 * S2) + h2 * S2 + wi).reshape(-1)     # [80]
        dst = (c2i * S2 + wi).reshape(-1) + h2 * LANE
        w1cat = w1cat.at[dst, :].set(fw1[src, :])

    return (m1.astype(bf16), b1row, m2.astype(bf16), b2row, w1cat.astype(bf16),
            fb1.reshape(1, NFC1), fw2.astype(bf16), fb2.reshape(1, NOUT))


# ----------------------------------------------------------------------------------
# Forward: cheap slice+concat input prep + one batch-tiled pallas_call.
# ----------------------------------------------------------------------------------
def cnn_forward(x_nchw, prep, block_b=128):
    m1, b1row, m2, b2row, w1cat, fb1row, fw2b, fb2row = prep
    B = x_nchw.shape[0]
    Bblk = min(block_b, _round_up(B, 8))      # per-step batch tile, multiple of 8
    Bblk = _round_up(Bblk, 8)
    Bp = _round_up(B, Bblk)
    grid = (Bp // Bblk,)

    # Host-side input prep: cast bf16, pad batch, transpose to (row, batch, col) and
    # lane-concatenate the 6 shifted row sets with plain slices (no gather, no
    # redundant rows):  y[h1, b, d*28 + j] = x[b, 2*h1 + d, j].
    xb = jnp.pad(x_nchw[:, 0, :, :].astype(jnp.bfloat16),
                 ((0, Bp - B), (0, 0), (0, 0)))                # [Bp, 28, 28]
    xt = jnp.transpose(xb, (1, 0, 2))                          # [28, Bp, 28]
    y = jnp.concatenate([xt[d:d + 2 * S1 - 1:2] for d in range(K + 1)],
                        axis=-1)                               # [12, Bp, 168]

    const2d = lambda i: (0, 0)
    out = pl.pallas_call(
        cnn_fused_kernel,
        out_shape=jax.ShapeDtypeStruct((Bp, NOUT), jnp.float32),
        grid=grid,
        in_specs=[
            pl.BlockSpec((S1, Bblk, KC1), lambda i: (0, i, 0)),   # y (batch-tiled)
            pl.BlockSpec((KC1, 4 * LANE), const2d),               # m1  (resident)
            pl.BlockSpec((1, LANE), const2d),                     # b1row
            pl.BlockSpec((KC2, 4 * LANE), const2d),               # m2
            pl.BlockSpec((1, LANE), const2d),                     # b2row
            pl.BlockSpec((KFC, NFC1), const2d),                   # fc1 weights
            pl.BlockSpec((1, NFC1), const2d),                     # fc1 bias
            pl.BlockSpec((NFC1, NOUT), const2d),                  # fc2 weights
            pl.BlockSpec((1, NOUT), const2d),                     # fc2 bias
        ],
        out_specs=pl.BlockSpec((Bblk, NOUT), lambda i: (i, 0)),
        compiler_params=pltpu.CompilerParams(
            dimension_semantics=("parallel",),
            vmem_limit_bytes=32 * 1024 * 1024,
        ),
    )(y, m1, b1row, m2, b2row, w1cat, fb1row, fw2b, fb2row)
    return out[:B]


# ----------------------------------------------------------------------------------
# Pure-JAX reference for verification (f32, highest precision)
# ----------------------------------------------------------------------------------
def reference_forward(x, params):
    w1, b1, w2, b2, fw1, fb1, fw2, fb2 = params
    dn = ("NCHW", "OIHW", "NCHW")
    hi = jax.lax.Precision.HIGHEST
    y = jax.lax.conv_general_dilated(x, w1, (1, 1), "VALID",
                                     dimension_numbers=dn, precision=hi)
    y = y + b1[None, :, None, None]
    y = jax.lax.reduce_window(y, -jnp.inf, jax.lax.max, (1, 1, 2, 2), (1, 1, 2, 2),
                              "VALID")
    y = jnp.maximum(y, 0.0)
    y = jax.lax.conv_general_dilated(y, w2, (1, 1), "VALID",
                                     dimension_numbers=dn, precision=hi)
    y = y + b2[None, :, None, None]
    y = jax.lax.reduce_window(y, -jnp.inf, jax.lax.max, (1, 1, 2, 2), (1, 1, 2, 2),
                              "VALID")
    y = jnp.maximum(y, 0.0)
    y = y.reshape(y.shape[0], -1)
    y = jnp.maximum(jnp.dot(y, fw1, precision=hi) + fb1, 0.0)
    y = jnp.dot(y, fw2, precision=hi) + fb2
    return y


if __name__ == "__main__":
    key = jax.random.PRNGKey(0)
    ks = jax.random.split(key, 10)
    s = 0.1
    params = (
        s * jax.random.normal(ks[0], (10, 1, 5, 5), jnp.float32),   # conv1.weight
        s * jax.random.normal(ks[1], (10,), jnp.float32),           # conv1.bias
        s * jax.random.normal(ks[2], (20, 10, 5, 5), jnp.float32),  # conv2.weight
        s * jax.random.normal(ks[3], (20,), jnp.float32),           # conv2.bias
        s * jax.random.normal(ks[4], (320, 50), jnp.float32),       # fc1.weight ([in,out])
        s * jax.random.normal(ks[5], (50,), jnp.float32),           # fc1.bias
        s * jax.random.normal(ks[6], (50, 10), jnp.float32),        # fc2.weight ([in,out])
        s * jax.random.normal(ks[7], (10,), jnp.float32),           # fc2.bias
    )
    prep = prepare_weights(params)       # one-time host-side weight re-layout

    # The architecture fixes the spatial size: fc1 expects 320 = 20*4*4 -> 28x28, Cin=1.
    # bf16 matmul operands (f32 accumulation) => tolerance 4e-2 vs the f32 reference.
    x = jax.random.normal(ks[8], (2, 1, 28, 28), jnp.float32)
    fwd = jax.jit(cnn_forward, static_argnums=2)
    out = jax.block_until_ready(fwd(x, prep, 128))
    ref = reference_forward(x, params)
    assert out.shape == (2, 10), out.shape
    err = float(jnp.max(jnp.abs(out - ref)))
    assert err < 4e-2, f"mismatch vs reference: max abs err {err}"

    # Second config exercising a multi-step parallel batch grid (grid=3) + batch padding.
    x2 = jax.random.normal(ks[9], (20, 1, 28, 28), jnp.float32)
    out2 = jax.block_until_ready(fwd(x2, prep, 8))
    ref2 = reference_forward(x2, params)
    assert out2.shape == (20, 10), out2.shape
    err2 = float(jnp.max(jnp.abs(out2 - ref2)))
    assert err2 < 4e-2, f"mismatch vs reference (grid>1): max abs err {err2}"

    print("KERNEL_OK")
</pallas_src>

<mosaic_0001>
module attributes {stable_mosaic.version = 11 : i64} {
  func.func @cnn_fused_kernel(%arg0: i32, %arg1: memref<12x8x168xbf16, #tpu.memory_space<vmem>>, %arg2: memref<168x512xbf16, #tpu.memory_space<vmem>>, %arg3: memref<1x128xf32, #tpu.memory_space<vmem>>, %arg4: memref<768x512xbf16, #tpu.memory_space<vmem>>, %arg5: memref<1x128xf32, #tpu.memory_space<vmem>>, %arg6: memref<512x50xbf16, #tpu.memory_space<vmem>>, %arg7: memref<1x50xf32, #tpu.memory_space<vmem>>, %arg8: memref<50x10xbf16, #tpu.memory_space<vmem>>, %arg9: memref<1x10xf32, #tpu.memory_space<vmem>>, %arg10: memref<8x10xf32, #tpu.memory_space<vmem>>) attributes {dimension_semantics = [#tpu.dimension_semantics<parallel>], iteration_bounds = array<i64: 1>, scalar_prefetch = 0 : i64, scratch_operands = 0 : i64, tpu.core_type = #tpu.core_type<tc>, window_params = [{transform_indices = @transform_0, window_bounds = array<i64: 12, 8, 168>}, {pipeline_mode = #tpu.pipeline_mode<synchronous>, transform_indices = @transform_1, window_bounds = array<i64: 168, 512>}, {pipeline_mode = #tpu.pipeline_mode<synchronous>, transform_indices = @transform_2, window_bounds = array<i64: 1, 128>}, {pipeline_mode = #tpu.pipeline_mode<synchronous>, transform_indices = @transform_3, window_bounds = array<i64: 768, 512>}, {pipeline_mode = #tpu.pipeline_mode<synchronous>, transform_indices = @transform_4, window_bounds = array<i64: 1, 128>}, {pipeline_mode = #tpu.pipeline_mode<synchronous>, transform_indices = @transform_5, window_bounds = array<i64: 512, 50>}, {pipeline_mode = #tpu.pipeline_mode<synchronous>, transform_indices = @transform_6, window_bounds = array<i64: 1, 50>}, {pipeline_mode = #tpu.pipeline_mode<synchronous>, transform_indices = @transform_7, window_bounds = array<i64: 50, 10>}, {pipeline_mode = #tpu.pipeline_mode<synchronous>, transform_indices = @transform_8, window_bounds = array<i64: 1, 10>}, {transform_indices = @transform_9, window_bounds = array<i64: 8, 10>}]} {
    %c0 = arith.constant 0 : index
    %c0_0 = arith.constant 0 : index
    %c0_1 = arith.constant 0 : index
    %0 = vector.load %arg1[%c0, %c0_0, %c0_1] : memref<12x8x168xbf16, #tpu.memory_space<vmem>>, vector<12x8x168xbf16>
    %1 = vector.shape_cast %0 : vector<12x8x168xbf16> to vector<96x168xbf16>
    %c0_2 = arith.constant 0 : index
    %c0_3 = arith.constant 0 : index
    %2 = vector.load %arg2[%c0_2, %c0_3] : memref<168x512xbf16, #tpu.memory_space<vmem>>, vector<168x512xbf16>
    %cst = arith.constant dense<0.000000e+00> : vector<96x512xf32>
    %3 = tpu.matmul %1, %2, %cst {dimension_numbers = #tpu.dot_dimension_numbers<[1], [0], [0], [1], [0, 0, 1, 1], [], []>} : vector<96x168xbf16>, vector<168x512xbf16>, vector<96x512xf32> -> vector<96x512xf32>
    %4 = vector.extract_strided_slice %3 {offsets = [0, 0], sizes = [96, 256], strides = [1, 1]} : vector<96x512xf32> to vector<96x256xf32>
    %5 = vector.extract_strided_slice %3 {offsets = [0, 256], sizes = [96, 256], strides = [1, 1]} : vector<96x512xf32> to vector<96x256xf32>
    %6 = arith.maximumf %4, %5 : vector<96x256xf32>
    %7 = vector.extract_strided_slice %6 {offsets = [0, 0], sizes = [96, 128], strides = [1, 1]} : vector<96x256xf32> to vector<96x128xf32>
    %8 = vector.extract_strided_slice %6 {offsets = [0, 128], sizes = [96, 128], strides = [1, 1]} : vector<96x256xf32> to vector<96x128xf32>
    %9 = arith.maximumf %7, %8 : vector<96x128xf32>
    %c0_4 = arith.constant 0 : index
    %c0_5 = arith.constant 0 : index
    %10 = vector.load %arg3[%c0_4, %c0_5] : memref<1x128xf32, #tpu.memory_space<vmem>>, vector<1x128xf32>
    %11 = vector.broadcast %10 : vector<1x128xf32> to vector<96x128xf32>
    %12 = arith.addf %9, %11 : vector<96x128xf32>
    %cst_6 = arith.constant 0.000000e+00 : f32
    %13 = vector.broadcast %cst_6 : f32 to vector<96x128xf32>
    %14 = arith.maximumf %12, %13 : vector<96x128xf32>
    %15 = arith.truncf %14 : vector<96x128xf32> to vector<96x128xbf16>
    %16 = vector.extract_strided_slice %15 {offsets = [0, 0], sizes = [8, 128], strides = [1, 1]} : vector<96x128xbf16> to vector<8x128xbf16>
    %17 = vector.extract_strided_slice %15 {offsets = [8, 0], sizes = [8, 128], strides = [1, 1]} : vector<96x128xbf16> to vector<8x128xbf16>
    %18 = vector.extract_strided_slice %15 {offsets = [16, 0], sizes = [8, 128], strides = [1, 1]} : vector<96x128xbf16> to vector<8x128xbf16>
    %19 = vector.extract_strided_slice %15 {offsets = [24, 0], sizes = [8, 128], strides = [1, 1]} : vector<96x128xbf16> to vector<8x128xbf16>
    %20 = vector.extract_strided_slice %15 {offsets = [32, 0], sizes = [8, 128], strides = [1, 1]} : vector<96x128xbf16> to vector<8x128xbf16>
    %21 = vector.extract_strided_slice %15 {offsets = [40, 0], sizes = [8, 128], strides = [1, 1]} : vector<96x128xbf16> to vector<8x128xbf16>
    %22 = tpu.concatenate %16, %17, %18, %19, %20, %21 in 1 : vector<8x128xbf16>, vector<8x128xbf16>, vector<8x128xbf16>, vector<8x128xbf16>, vector<8x128xbf16>, vector<8x128xbf16> -> vector<8x768xbf16>
    %23 = vector.extract_strided_slice %15 {offsets = [16, 0], sizes = [8, 128], strides = [1, 1]} : vector<96x128xbf16> to vector<8x128xbf16>
    %24 = vector.extract_strided_slice %15 {offsets = [24, 0], sizes = [8, 128], strides = [1, 1]} : vector<96x128xbf16> to vector<8x128xbf16>
    %25 = vector.extract_strided_slice %15 {offsets = [32, 0], sizes = [8, 128], strides = [1, 1]} : vector<96x128xbf16> to vector<8x128xbf16>
    %26 = vector.extract_strided_slice %15 {offsets = [40, 0], sizes = [8, 128], strides = [1, 1]} : vector<96x128xbf16> to vector<8x128xbf16>
    %27 = vector.extract_strided_slice %15 {offsets = [48, 0], sizes = [8, 128], strides = [1, 1]} : vector<96x128xbf16> to vector<8x128xbf16>
    %28 = vector.extract_strided_slice %15 {offsets = [56, 0], sizes = [8, 128], strides = [1, 1]} : vector<96x128xbf16> to vector<8x128xbf16>
    %29 = tpu.concatenate %23, %24, %25, %26, %27, %28 in 1 : vector<8x128xbf16>, vector<8x128xbf16>, vector<8x128xbf16>, vector<8x128xbf16>, vector<8x128xbf16>, vector<8x128xbf16> -> vector<8x768xbf16>
    %30 = vector.extract_strided_slice %15 {offsets = [32, 0], sizes = [8, 128], strides = [1, 1]} : vector<96x128xbf16> to vector<8x128xbf16>
    %31 = vector.extract_strided_slice %15 {offsets = [40, 0], sizes = [8, 128], strides = [1, 1]} : vector<96x128xbf16> to vector<8x128xbf16>
    %32 = vector.extract_strided_slice %15 {offsets = [48, 0], sizes = [8, 128], strides = [1, 1]} : vector<96x128xbf16> to vector<8x128xbf16>
    %33 = vector.extract_strided_slice %15 {offsets = [56, 0], sizes = [8, 128], strides = [1, 1]} : vector<96x128xbf16> to vector<8x128xbf16>
    %34 = vector.extract_strided_slice %15 {offsets = [64, 0], sizes = [8, 128], strides = [1, 1]} : vector<96x128xbf16> to vector<8x128xbf16>
    %35 = vector.extract_strided_slice %15 {offsets = [72, 0], sizes = [8, 128], strides = [1, 1]} : vector<96x128xbf16> to vector<8x128xbf16>
    %36 = tpu.concatenate %30, %31, %32, %33, %34, %35 in 1 : vector<8x128xbf16>, vector<8x128xbf16>, vector<8x128xbf16>, vector<8x128xbf16>, vector<8x128xbf16>, vector<8x128xbf16> -> vector<8x768xbf16>
    %37 = vector.extract_strided_slice %15 {offsets = [48, 0], sizes = [8, 128], strides = [1, 1]} : vector<96x128xbf16> to vector<8x128xbf16>
    %38 = vector.extract_strided_slice %15 {offsets = [56, 0], sizes = [8, 128], strides = [1, 1]} : vector<96x128xbf16> to vector<8x128xbf16>
    %39 = vector.extract_strided_slice %15 {offsets = [64, 0], sizes = [8, 128], strides = [1, 1]} : vector<96x128xbf16> to vector<8x128xbf16>
    %40 = vector.extract_strided_slice %15 {offsets = [72, 0], sizes = [8, 128], strides = [1, 1]} : vector<96x128xbf16> to vector<8x128xbf16>
    %41 = vector.extract_strided_slice %15 {offsets = [80, 0], sizes = [8, 128], strides = [1, 1]} : vector<96x128xbf16> to vector<8x128xbf16>
    %42 = vector.extract_strided_slice %15 {offsets = [88, 0], sizes = [8, 128], strides = [1, 1]} : vector<96x128xbf16> to vector<8x128xbf16>
    %43 = tpu.concatenate %37, %38, %39, %40, %41, %42 in 1 : vector<8x128xbf16>, vector<8x128xbf16>, vector<8x128xbf16>, vector<8x128xbf16>, vector<8x128xbf16>, vector<8x128xbf16> -> vector<8x768xbf16>
    %44 = tpu.concatenate %22, %29, %36, %43 in 0 : vector<8x768xbf16>, vector<8x768xbf16>, vector<8x768xbf16>, vector<8x768xbf16> -> vector<32x768xbf16>
    %c0_7 = arith.constant 0 : index
    %c0_8 = arith.constant 0 : index
    %45 = vector.load %arg4[%c0_7, %c0_8] : memref<768x512xbf16, #tpu.memory_space<vmem>>, vector<768x512xbf16>
    %cst_9 = arith.constant dense<0.000000e+00> : vector<32x512xf32>
    %46 = tpu.matmul %44, %45, %cst_9 {dimension_numbers = #tpu.dot_dimension_numbers<[1], [0], [0], [1], [0, 0, 1, 1], [], []>} : vector<32x768xbf16>, vector<768x512xbf16>, vector<32x512xf32> -> vector<32x512xf32>
    %47 = vector.extract_strided_slice %46 {offsets = [0, 0], sizes = [32, 256], strides = [1, 1]} : vector<32x512xf32> to vector<32x256xf32>
    %48 = vector.extract_strided_slice %46 {offsets = [0, 256], sizes = [32, 256], strides = [1, 1]} : vector<32x512xf32> to vector<32x256xf32>
    %49 = arith.maximumf %47, %48 : vector<32x256xf32>
    %50 = vector.extract_strided_slice %49 {offsets = [0, 0], sizes = [32, 128], strides = [1, 1]} : vector<32x256xf32> to vector<32x128xf32>
    %51 = vector.extract_strided_slice %49 {offsets = [0, 128], sizes = [32, 128], strides = [1, 1]} : vector<32x256xf32> to vector<32x128xf32>
    %52 = arith.maximumf %50, %51 : vector<32x128xf32>
    %c0_10 = arith.constant 0 : index
    %c0_11 = arith.constant 0 : index
    %53 = vector.load %arg5[%c0_10, %c0_11] : memref<1x128xf32, #tpu.memory_space<vmem>>, vector<1x128xf32>
    %54 = vector.broadcast %53 : vector<1x128xf32> to vector<32x128xf32>
    %55 = arith.addf %52, %54 : vector<32x128xf32>
    %cst_12 = arith.constant 0.000000e+00 : f32
    %56 = vector.broadcast %cst_12 : f32 to vector<32x128xf32>
    %57 = arith.maximumf %55, %56 : vector<32x128xf32>
    %58 = arith.truncf %57 : vector<32x128xf32> to vector<32x128xbf16>
    %59 = vector.extract_strided_slice %58 {offsets = [0, 0], sizes = [8, 128], strides = [1, 1]} : vector<32x128xbf16> to vector<8x128xbf16>
    %60 = vector.extract_strided_slice %58 {offsets = [8, 0], sizes = [8, 128], strides = [1, 1]} : vector<32x128xbf16> to vector<8x128xbf16>
    %61 = vector.extract_strided_slice %58 {offsets = [16, 0], sizes = [8, 128], strides = [1, 1]} : vector<32x128xbf16> to vector<8x128xbf16>
    %62 = vector.extract_strided_slice %58 {offsets = [24, 0], sizes = [8, 128], strides = [1, 1]} : vector<32x128xbf16> to vector<8x128xbf16>
    %63 = tpu.concatenate %59, %60, %61, %62 in 1 : vector<8x128xbf16>, vector<8x128xbf16>, vector<8x128xbf16>, vector<8x128xbf16> -> vector<8x512xbf16>
    %c0_13 = arith.constant 0 : index
    %c0_14 = arith.constant 0 : index
    %64 = vector.load %arg6[%c0_13, %c0_14] : memref<512x50xbf16, #tpu.memory_space<vmem>>, vector<512x50xbf16>
    %cst_15 = arith.constant dense<0.000000e+00> : vector<8x50xf32>
    %65 = tpu.matmul %63, %64, %cst_15 {dimension_numbers = #tpu.dot_dimension_numbers<[1], [0], [0], [1], [0, 0, 1, 1], [], []>} : vector<8x512xbf16>, vector<512x50xbf16>, vector<8x50xf32> -> vector<8x50xf32>
    %c0_16 = arith.constant 0 : index
    %c0_17 = arith.constant 0 : index
    %66 = vector.load %arg7[%c0_16, %c0_17] : memref<1x50xf32, #tpu.memory_space<vmem>>, vector<1x50xf32>
    %67 = vector.broadcast %66 : vector<1x50xf32> to vector<8x50xf32>
    %68 = arith.addf %65, %67 : vector<8x50xf32>
    %cst_18 = arith.constant 0.000000e+00 : f32
    %69 = vector.broadcast %cst_18 : f32 to vector<8x50xf32>
    %70 = arith.maximumf %68, %69 : vector<8x50xf32>
    %71 = arith.truncf %70 : vector<8x50xf32> to vector<8x50xbf16>
    %c0_19 = arith.constant 0 : index
    %c0_20 = arith.constant 0 : index
    %72 = vector.load %arg8[%c0_19, %c0_20] : memref<50x10xbf16, #tpu.memory_space<vmem>>, vector<50x10xbf16>
    %cst_21 = arith.constant dense<0.000000e+00> : vector<8x10xf32>
    %73 = tpu.matmul %71, %72, %cst_21 {dimension_numbers = #tpu.dot_dimension_numbers<[1], [0], [0], [1], [0, 0, 1, 1], [], []>} : vector<8x50xbf16>, vector<50x10xbf16>, vector<8x10xf32> -> vector<8x10xf32>
    %c0_22 = arith.constant 0 : index
    %c0_23 = arith.constant 0 : index
    %74 = vector.load %arg9[%c0_22, %c0_23] : memref<1x10xf32, #tpu.memory_space<vmem>>, vector<1x10xf32>
    %75 = vector.broadcast %74 : vector<1x10xf32> to vector<8x10xf32>
    %76 = arith.addf %73, %75 : vector<8x10xf32>
    %c0_24 = arith.constant 0 : index
    %c0_25 = arith.constant 0 : index
    %77 = vector.load %arg10[%c0_24, %c0_25] : memref<8x10xf32, #tpu.memory_space<vmem>>, vector<8x10xf32>
    tpu.vector_store %arg10[%c0_24, %c0_25], %76 {strides = array<i32>} : memref<8x10xf32, #tpu.memory_space<vmem>>, vector<8x10xf32>,
    return
  }
  func.func @transform_0(%arg0: i32) -> (i32, i32, i32) {
    %c0_i32 = arith.constant 0 : i32
    %c0_i32_0 = arith.constant 0 : i32
    %c0_i32_1 = arith.constant 0 : i32
    return %c0_i32, %arg0, %c0_i32_0 : i32, i32, i32
  }
  func.func @transform_1(%arg0: i32) -> (i32, i32) {
    %c0_i32 = arith.constant 0 : i32
    %c0_i32_0 = arith.constant 0 : i32
    %c0_i32_1 = arith.constant 0 : i32
    return %c0_i32, %c0_i32_0 : i32, i32
  }
  func.func @transform_2(%arg0: i32) -> (i32, i32) {
    %c0_i32 = arith.constant 0 : i32
    %c0_i32_0 = arith.constant 0 : i32
    %c0_i32_1 = arith.constant 0 : i32
    return %c0_i32, %c0_i32_0 : i32, i32
  }
  func.func @transform_3(%arg0: i32) -> (i32, i32) {
    %c0_i32 = arith.constant 0 : i32
    %c0_i32_0 = arith.constant 0 : i32
    %c0_i32_1 = arith.constant 0 : i32
    return %c0_i32, %c0_i32_0 : i32, i32
  }
  func.func @transform_4(%arg0: i32) -> (i32, i32) {
    %c0_i32 = arith.constant 0 : i32
    %c0_i32_0 = arith.constant 0 : i32
    %c0_i32_1 = arith.constant 0 : i32
    return %c0_i32, %c0_i32_0 : i32, i32
  }
  func.func @transform_5(%arg0: i32) -> (i32, i32) {
    %c0_i32 = arith.constant 0 : i32
    %c0_i32_0 = arith.constant 0 : i32
    %c0_i32_1 = arith.constant 0 : i32
    return %c0_i32, %c0_i32_0 : i32, i32
  }
  func.func @transform_6(%arg0: i32) -> (i32, i32) {
    %c0_i32 = arith.constant 0 : i32
    %c0_i32_0 = arith.constant 0 : i32
    %c0_i32_1 = arith.constant 0 : i32
    return %c0_i32, %c0_i32_0 : i32, i32
  }
  func.func @transform_7(%arg0: i32) -> (i32, i32) {
    %c0_i32 = arith.constant 0 : i32
    %c0_i32_0 = arith.constant 0 : i32
    %c0_i32_1 = arith.constant 0 : i32
    return %c0_i32, %c0_i32_0 : i32, i32
  }
  func.func @transform_8(%arg0: i32) -> (i32, i32) {
    %c0_i32 = arith.constant 0 : i32
    %c0_i32_0 = arith.constant 0 : i32
    %c0_i32_1 = arith.constant 0 : i32
    return %c0_i32, %c0_i32_0 : i32, i32
  }
  func.func @transform_9(%arg0: i32) -> (i32, i32) {
    %c0_i32 = arith.constant 0 : i32
    %c0_i32_0 = arith.constant 0 : i32
    return %arg0, %c0_i32 : i32, i32
  }
}

</mosaic_0001>

<llo_original>
// kernel: cnn_forward.1
$region0: #{cnn_forward.1}
  #allocation0 [shape = 'u32[]', space=smem, size = 0x4, offset = 0x4, fixed_abs, tag = 'smem constant byte address 0x4 - core index']
  #allocation1 [shape = 'u32[72,128]{1,0:T(1,128)}', space=vmem, size = 0x9000, scoped, tag = 'internal scratch']
  %s0 = inlined_call_operand.vmem [shape: bf16[12,8,168], index: 0, kind: input, shape index: {}]
  %s1 = inlined_call_operand.vmem [shape: bf16[168,512], index: 1, kind: input, shape index: {}]
  %s2 = inlined_call_operand.vmem [shape: f32[1,128], index: 2, kind: input, shape index: {}]
  %s3 = inlined_call_operand.hbm [shape: bf16[768,512], index: 3, kind: input, shape index: {}]
  %s4 = inlined_call_operand.vmem [shape: f32[1,128], index: 4, kind: input, shape index: {}]
  %s5 = inlined_call_operand.vmem [shape: bf16[512,50], index: 5, kind: input, shape index: {}]
  %s6 = inlined_call_operand.vmem [shape: f32[1,50], index: 6, kind: input, shape index: {}]
  %s7 = inlined_call_operand.vmem [shape: bf16[50,10], index: 7, kind: input, shape index: {}]
  %s8 = inlined_call_operand.vmem [shape: f32[1,10], index: 8, kind: input, shape index: {}]
  %s9 = inlined_call_operand.vmem [shape: f32[8,10], index: 9, kind: output, shape index: {}]
  %s10 = sld [smem:[#allocation0]]
  $region50: #{cnn_forward.1} parent=0
    _
  %s12 = ssub.s32 1, %s10
  %s13 = scalar_select 0, %s12, %s10
  $region1: #{cnn_forward.1} parent=0
    #allocation2 [shape = 'u8[786432]{0}', space=vmem, size = 0xc0000, scoped, tag = 'input window, operand 3, single buffered']
    #allocation3 [shape = 's32[1]{0}', space=sflag, size = 0x4, scoped, tag = 'scoped memory for cnn_forward.1']
    %14 = vsyncpa [#allocation3], 0
    // Predicated region
    $region2: #{cnn_forward.1} parent=1 // pred_check
      _
    $region3: #{cnn_forward.1} parent=1 // pred_check_branch
      %16 = sbr.rel (0) target = $region5
    $region4: #{cnn_forward.1} parent=1 // pred_region
      _
    $region5: #{cnn_forward.1} parent=1 // pred_fallthru
      _
    // Predicated region
    $region6: #{cnn_forward.1} parent=1 // pred_check
      _
    $region7: #{cnn_forward.1} parent=1 // pred_check_branch
      %18 = sbr.rel (0) target = $region9
    $region8: #{cnn_forward.1} parent=1 // pred_region
      _
    $region9: #{cnn_forward.1} parent=1 // pred_fallthru
      _
    // Predicated region
    $region10: #{cnn_forward.1} parent=1 // pred_check
      _
    $region11: #{cnn_forward.1} parent=1 // pred_check_branch
      %20 = sbr.rel (0) target = $region13
    $region12: #{cnn_forward.1} parent=1 // pred_region
      _
    $region13: #{cnn_forward.1} parent=1 // pred_fallthru
      _
    // Predicated region
    $region14: #{cnn_forward.1} parent=1 // pred_check
      _
    $region15: #{cnn_forward.1} parent=1 // pred_check_branch
      %22 = sbr.rel (0) target = $region17
    $region16: #{cnn_forward.1} parent=1 // pred_region
      %24 = vsyncadd [#allocation3], 0
      %s25 = sshll.u32 %s3, 4
      %s26 = int_to_ptr.hbm [resolvable:$true] %s25
      %s27 = sshll.u32 [#allocation2], 4
      %s28 = int_to_ptr.vmem [resolvable:$true] %s27
      %33 = dma.hbm_to_vmem [thread:$0]  %s26, 24576, %s28, [#allocation3], 256, 256, 16
    $region17: #{cnn_forward.1} parent=1 // pred_fallthru
      _
    // Predicated region
    $region18: #{cnn_forward.1} parent=1 // pred_check
      _
    $region19: #{cnn_forward.1} parent=1 // pred_check_branch
      %35 = sbr.rel (0) target = $region21
    $region20: #{cnn_forward.1} parent=1 // pred_region
      _
    $region21: #{cnn_forward.1} parent=1 // pred_fallthru
      _
    // Predicated region
    $region22: #{cnn_forward.1} parent=1 // pred_check
      _
    $region23: #{cnn_forward.1} parent=1 // pred_check_branch
      %37 = sbr.rel (0) target = $region25
    $region24: #{cnn_forward.1} parent=1 // pred_region
      _
    $region25: #{cnn_forward.1} parent=1 // pred_fallthru
      _
    // Predicated region
    $region26: #{cnn_forward.1} parent=1 // pred_check
      _
    $region27: #{cnn_forward.1} parent=1 // pred_check_branch
      %39 = sbr.rel (0) target = $region29
    $region28: #{cnn_forward.1} parent=1 // pred_region
      _
    $region29: #{cnn_forward.1} parent=1 // pred_fallthru
      _
    // Predicated region
    $region30: #{cnn_forward.1} parent=1 // pred_check
      _
    $region31: #{cnn_forward.1} parent=1 // pred_check_branch
      %41 = sbr.rel (0) target = $region33
    $region32: #{cnn_forward.1} parent=1 // pred_region
      _
    $region33: #{cnn_forward.1} parent=1 // pred_fallthru
      _
    // Predicated region
    $region34: #{cnn_forward.1} parent=1 // pred_check
      _
    $region35: #{cnn_forward.1} parent=1 // pred_check_branch
      %43 = sbr.rel (0) target = $region37
    $region36: #{cnn_forward.1} parent=1 // pred_region
      _
    $region37: #{cnn_forward.1} parent=1 // pred_fallthru
      _
    // Predicated region
    $region38: #{cnn_forward.1} parent=1 // pred_check
      _
    $region39: #{cnn_forward.1} parent=1 // pred_check_branch
      %45 = sbr.rel (0) target = $region41
    $region40: #{cnn_forward.1} parent=1 // pred_region
      %47 = dma.done [#allocation3], 24576
    $region41: #{cnn_forward.1} parent=1 // pred_fallthru
      _
    %v49 = vld [vmem:[%s0] sm:$0xff]
    %v50 = vld [vmem:[%s0 + $0x8] sm:$0xff]
    %v51 = vld [vmem:[%s0 + $0x10] sm:$0xff]
    %v52 = vld [vmem:[%s0 + $0x18] sm:$0xff]
    %v53 = vld [vmem:[%s0 + $0x20] sm:$0xff]
    %v54 = vld [vmem:[%s0 + $0x28] sm:$0xff]
    %v55 = vld [vmem:[%s0 + $0x30] sm:$0xff]
    %v56 = vld [vmem:[%s0 + $0x38] sm:$0xff]
    %v57 = vld [vmem:[%s0 + $0x40] sm:$0xff]
    %v58 = vld [vmem:[%s0 + $0x48] sm:$0xff]
    %v59 = vld [vmem:[%s0 + $0x50] sm:$0xff]
    %v60 = vld [vmem:[%s0 + $0x58] sm:$0xff]
    %v61 = vld [vmem:[%s1] sm:$0xff]
    %v62 = vld [vmem:[%s1 + $0x8] sm:$0xff]
    %v63 = vld [vmem:[%s1 + $0x10] sm:$0xff]
    %v64 = vld [vmem:[%s1 + $0x18] sm:$0xff]
    %v65 = vld [vmem:[%s1 + $0x20] sm:$0xff]
    %v66 = vld [vmem:[%s1 + $0x28] sm:$0xff]
    %v67 = vld [vmem:[%s1 + $0x30] sm:$0xff]
    %v68 = vld [vmem:[%s1 + $0x38] sm:$0xff]
    %v69 = vld [vmem:[%s1 + $0x40] sm:$0xff]
    %v70 = vld [vmem:[%s1 + $0x48] sm:$0xff]
    %v71 = vld [vmem:[%s1 + $0x50] sm:$0xff]
    %v72 = vld [vmem:[%s1 + $0x58] sm:$0xff]
    %v73 = vld [vmem:[%s1 + $0x60] sm:$0xff]
    %v74 = vld [vmem:[%s1 + $0x68] sm:$0xff]
    %v75 = vld [vmem:[%s1 + $0x70] sm:$0xff]
    %v76 = vld [vmem:[%s1 + $0x78] sm:$0xff]
    %v77 = vld [vmem:[%s1 + $0x80] sm:$0xff]
    %v78 = vld [vmem:[%s1 + $0x88] sm:$0xff]
    %v79 = vld [vmem:[%s1 + $0x90] sm:$0xff]
    %v80 = vld [vmem:[%s1 + $0x98] sm:$0xff]
    %v81 = vld [vmem:[%s1 + $0xa0] sm:$0xff]
    %v82 = vld [vmem:[%s1 + $0xa8] sm:$0xff]
    %v83 = vld [vmem:[%s1 + $0xb0] sm:$0xff]
    %v84 = vld [vmem:[%s1 + $0xb8] sm:$0xff]
    %v85 = vld [vmem:[%s1 + $0xc0] sm:$0xff]
    %v86 = vld [vmem:[%s1 + $0xc8] sm:$0xff]
    %v87 = vld [vmem:[%s1 + $0xd0] sm:$0xff]
    %v88 = vld [vmem:[%s1 + $0xd8] sm:$0xff]
    %v89 = vld [vmem:[%s1 + $0xe0] sm:$0xff]
    %v90 = vld [vmem:[%s1 + $0xe8] sm:$0xff]
    %v91 = vld [vmem:[%s1 + $0xf0] sm:$0xff]
    %v92 = vld [vmem:[%s1 + $0xf8] sm:$0xff]
    %v93 = vld [vmem:[%s1 + $0x100] sm:$0xff]
    %v94 = vld [vmem:[%s1 + $0x108] sm:$0xff]
    %v95 = vld [vmem:[%s1 + $0x110] sm:$0xff]
    %v96 = vld [vmem:[%s1 + $0x118] sm:$0xff]
    %v97 = vld [vmem:[%s1 + $0x120] sm:$0xff]
    %v98 = vld [vmem:[%s1 + $0x128] sm:$0xff]
    %v99 = vld [vmem:[%s1 + $0x130] sm:$0xff]
    %v100 = vld [vmem:[%s1 + $0x138] sm:$0xff]
    %v101 = vld [vmem:[%s1 + $0x140] sm:$0xff]
    %v102 = vld [vmem:[%s1 + $0x148] sm:$0xff]
    %v115 = vunpack.c.l.b16 %v49
    %v116 = vunpack.c.h.b16 %v49
    %v117 = vunpack.c.l.b16 %v50
    %v118 = vunpack.c.h.b16 %v50
    %v119 = vunpack.c.l.b16 %v51
    %v120 = vunpack.c.h.b16 %v51
    %v121 = vunpack.c.l.b16 %v52
    %v122 = vunpack.c.h.b16 %v52
    %v123 = vunpack.c.l.b16 %v53
    %v124 = vunpack.c.h.b16 %v53
    %v125 = vunpack.c.l.b16 %v54
    %v126 = vunpack.c.h.b16 %v54
    %v127 = vunpack.c.l.b16 %v55
    %v128 = vunpack.c.h.b16 %v55
    %v129 = vunpack.c.l.b16 %v56
    %v130 = vunpack.c.h.b16 %v56
    %v131 = vunpack.c.l.b16 %v57
    %v132 = vunpack.c.h.b16 %v57
    %v133 = vunpack.c.l.b16 %v58
    %v134 = vunpack.c.h.b16 %v58
    %v135 = vunpack.c.l.b16 %v59
    %v136 = vunpack.c.h.b16 %v59
    %v137 = vunpack.c.l.b16 %v60
    %v138 = vunpack.c.h.b16 %v60
    %v139 = vpack.c.b16 %v117, %v115
    %v140 = vpack.c.b16 %v118, %v116
    %v141 = vpack.c.b16 %v121, %v119
    %v142 = vpack.c.b16 %v122, %v120
    %v143 = vpack.c.b16 %v125, %v123
    %v144 = vpack.c.b16 %v126, %v124
    %v145 = vpack.c.b16 %v129, %v127
    %v146 = vpack.c.b16 %v130, %v128
    %v147 = vpack.c.b16 %v133, %v131
    %v148 = vpack.c.b16 %v134, %v132
    %v149 = vpack.c.b16 %v137, %v135
    %v150 = vpack.c.b16 %v138, %v136
    %v199 = vunpack.c.l.b16 %v61
    %v200 = vunpack.c.h.b16 %v61
    %v201 = vunpack.c.l.b16 %v62
    %v202 = vunpack.c.h.b16 %v62
    %v203 = vunpack.c.l.b16 %v63
    %v204 = vunpack.c.h.b16 %v63
    %v205 = vunpack.c.l.b16 %v64
    %v206 = vunpack.c.h.b16 %v64
    %v207 = vunpack.c.l.b16 %v65
    %v208 = vunpack.c.h.b16 %v65
    %v209 = vunpack.c.l.b16 %v66
    %v210 = vunpack.c.h.b16 %v66
    %v211 = vunpack.c.l.b16 %v67
    %v212 = vunpack.c.h.b16 %v67
    %v213 = vunpack.c.l.b16 %v68
    %v214 = vunpack.c.h.b16 %v68
    %v215 = vunpack.c.l.b16 %v69
    %v216 = vunpack.c.h.b16 %v69
    %v217 = vunpack.c.l.b16 %v70
    %v218 = vunpack.c.h.b16 %v70
    %v219 = vunpack.c.l.b16 %v71
    %v220 = vunpack.c.h.b16 %v71
    %v221 = vunpack.c.l.b16 %v72
    %v222 = vunpack.c.h.b16 %v72
    %v223 = vunpack.c.l.b16 %v73
    %v224 = vunpack.c.h.b16 %v73
    %v225 = vunpack.c.l.b16 %v74
    %v226 = vunpack.c.h.b16 %v74
    %v227 = vunpack.c.l.b16 %v75
    %v228 = vunpack.c.h.b16 %v75
    %v229 = vunpack.c.l.b16 %v76
    %v230 = vunpack.c.h.b16 %v76
    %v231 = vunpack.c.l.b16 %v77
    %v232 = vunpack.c.h.b16 %v77
    %v233 = vunpack.c.l.b16 %v78
    %v234 = vunpack.c.h.b16 %v78
    %v235 = vunpack.c.l.b16 %v79
    %v236 = vunpack.c.h.b16 %v79
    %v237 = vunpack.c.l.b16 %v80
    %v238 = vunpack.c.h.b16 %v80
    %v239 = vunpack.c.l.b16 %v81
    %v240 = vunpack.c.h.b16 %v81
    %v241 = vunpack.c.l.b16 %v82
    %v242 = vunpack.c.h.b16 %v82
    %v243 = vunpack.c.l.b16 %v83
    %v244 = vunpack.c.h.b16 %v83
    %v245 = vunpack.c.l.b16 %v84
    %v246 = vunpack.c.h.b16 %v84
    %v247 = vunpack.c.l.b16 %v85
    %v248 = vunpack.c.h.b16 %v85
    %v249 = vunpack.c.l.b16 %v86
    %v250 = vunpack.c.h.b16 %v86
    %v251 = vunpack.c.l.b16 %v87
    %v252 = vunpack.c.h.b16 %v87
    %v253 = vunpack.c.l.b16 %v88
    %v254 = vunpack.c.h.b16 %v88
    %v255 = vunpack.c.l.b16 %v89
    %v256 = vunpack.c.h.b16 %v89
    %v257 = vunpack.c.l.b16 %v90
    %v258 = vunpack.c.h.b16 %v90
    %v259 = vunpack.c.l.b16 %v91
    %v260 = vunpack.c.h.b16 %v91
    %v261 = vunpack.c.l.b16 %v92
    %v262 = vunpack.c.h.b16 %v92
    %v263 = vunpack.c.l.b16 %v93
    %v264 = vunpack.c.h.b16 %v93
    %v265 = vunpack.c.l.b16 %v94
    %v266 = vunpack.c.h.b16 %v94
    %v267 = vunpack.c.l.b16 %v95
    %v268 = vunpack.c.h.b16 %v95
    %v269 = vunpack.c.l.b16 %v96
    %v270 = vunpack.c.h.b16 %v96
    %v271 = vunpack.c.l.b16 %v97
    %v272 = vunpack.c.h.b16 %v97
    %v273 = vunpack.c.l.b16 %v98
    %v274 = vunpack.c.h.b16 %v98
    %v275 = vunpack.c.l.b16 %v99
    %v276 = vunpack.c.h.b16 %v99
    %v277 = vunpack.c.l.b16 %v100
    %v278 = vunpack.c.h.b16 %v100
    %v279 = vunpack.c.l.b16 %v101
    %v280 = vunpack.c.h.b16 %v101
    %v281 = vunpack.c.l.b16 %v102
    %v282 = vunpack.c.h.b16 %v102
    %v283 = vpack.c.b16 %v203, %v199
    %v284 = vpack.c.b16 %v204, %v200
    %v285 = vpack.c.b16 %v205, %v201
    %v286 = vpack.c.b16 %v206, %v202
    %v287 = vpack.c.b16 %v211, %v207
    %v288 = vpack.c.b16 %v212, %v208
    %v289 = vpack.c.b16 %v213, %v209
    %v290 = vpack.c.b16 %v214, %v210
    %v291 = vpack.c.b16 %v219, %v215
    %v292 = vpack.c.b16 %v220, %v216
    %v293 = vpack.c.b16 %v221, %v217
    %v294 = vpack.c.b16 %v222, %v218
    %v295 = vpack.c.b16 %v227, %v223
    %v296 = vpack.c.b16 %v228, %v224
    %v297 = vpack.c.b16 %v229, %v225
    %v298 = vpack.c.b16 %v230, %v226
    %v299 = vpack.c.b16 %v235, %v231
    %v300 = vpack.c.b16 %v236, %v232
    %v301 = vpack.c.b16 %v237, %v233
    %v302 = vpack.c.b16 %v238, %v234
    %v303 = vpack.c.b16 %v243, %v239
    %v304 = vpack.c.b16 %v244, %v240
    %v305 = vpack.c.b16 %v245, %v241
    %v306 = vpack.c.b16 %v246, %v242
    %v307 = vpack.c.b16 %v251, %v247
    %v308 = vpack.c.b16 %v252, %v248
    %v309 = vpack.c.b16 %v253, %v249
    %v310 = vpack.c.b16 %v254, %v250
    %v311 = vpack.c.b16 %v259, %v255
    %v312 = vpack.c.b16 %v260, %v256
    %v313 = vpack.c.b16 %v261, %v257
    %v314 = vpack.c.b16 %v262, %v258
    %v315 = vpack.c.b16 %v267, %v263
    %v316 = vpack.c.b16 %v268, %v264
    %v317 = vpack.c.b16 %v269, %v265
    %v318 = vpack.c.b16 %v270, %v266
    %v319 = vpack.c.b16 %v275, %v271
    %v320 = vpack.c.b16 %v276, %v272
    %v321 = vpack.c.b16 %v277, %v273
    %v322 = vpack.c.b16 %v278, %v274
    %v323 = vpack.c.b16 %v279, %v279
    %v324 = vpack.c.b16 %v280, %v280
    %v325 = vpack.c.b16 %v281, %v281
    %v326 = vpack.c.b16 %v282, %v282
    %vm367 = vcmask 326656
    %v369 = vsel %vm367, %v140, 0
    %v372 = vsel %vm367, %v142, 0
    %v375 = vsel %vm367, %v144, 0
    %v378 = vsel %vm367, %v146, 0
    %v381 = vsel %vm367, %v148, 0
    %v384 = vsel %vm367, %v150, 0
    %vm386 = vcmask 1043456
    %v388 = vsel %vm386, %v323, 0
    %v391 = vsel %vm386, %v324, 0
    %v394 = vsel %vm386, %v325, 0
    %v397 = vsel %vm386, %v326, 0
    %399 = vmatpush.bf16.msra.mxu0 %v311
    %400 = vmatpush.bf16.msra.mxu0 %v307
    %401 = vmatpush.bf16.msra.mxu0 %v303
    %402 = vmatpush.bf16.msra.mxu0 %v299
    %403 = vmatpush.bf16.msra.mxu0 %v295
    %404 = vmatpush.bf16.msra.mxu0 %v291
    %405 = vmatpush.bf16.msra.mxu0 %v287
    %406 = vmatpush.bf16.msra.mxu0 %v283
    %407 = vmatmul.bf16.gmra.mxu0 %v139
    %v408 = vpop.f32.mrf.mxu0
    %v409 = vadd.f32 0.0, %v408
    %v410 = vpop.f32.mrf.mxu0
    %v411 = vadd.f32 0.0, %v410
    %412 = vmatmul.bf16.gmra.mxu0 %v141
    %v413 = vpop.f32.mrf.mxu0
    %v414 = vadd.f32 0.0, %v413
    %v415 = vpop.f32.mrf.mxu0
    %v416 = vadd.f32 0.0, %v415
    %417 = vmatmul.bf16.gmra.mxu0 %v143
    %v418 = vpop.f32.mrf.mxu0
    %v419 = vadd.f32 0.0, %v418
    %v420 = vpop.f32.mrf.mxu0
    %v421 = vadd.f32 0.0, %v420
    %422 = vmatmul.bf16.gmra.mxu0 %v145
    %v423 = vpop.f32.mrf.mxu0
    %v424 = vadd.f32 0.0, %v423
    %v425 = vpop.f32.mrf.mxu0
    %v426 = vadd.f32 0.0, %v425
    %427 = vmatmul.bf16.gmra.mxu0 %v147
    %v428 = vpop.f32.mrf.mxu0
    %v429 = vadd.f32 0.0, %v428
    %v430 = vpop.f32.mrf.mxu0
    %v431 = vadd.f32 0.0, %v430
    %432 = vmatmul.bf16.gmra.mxu0 %v149
    %v433 = vpop.f32.mrf.mxu0
    %v434 = vadd.f32 0.0, %v433
    %v435 = vpop.f32.mrf.mxu0
    %v436 = vadd.f32 0.0, %v435
    %437 = vdwg.mxu0
    %438 = vmatpush.bf16.msra.mxu0 0
    %439 = vmatpush.bf16.msra.mxu0 0
    %440 = vmatpush.bf16.msra.mxu0 0
    %441 = vmatpush.bf16.msra.mxu0 0
    %442 = vmatpush.bf16.msra.mxu0 0
    %443 = vmatpush.bf16.msra.mxu0 %v388
    %444 = vmatpush.bf16.msra.mxu0 %v319
    %445 = vmatpush.bf16.msra.mxu0 %v315
    %446 = vmatmul.bf16.gmra.mxu0 %v369
    %v447 = vpop.f32.mrf.mxu0
    %v448 = vadd.f32 %v409, %v447
    %v449 = vpop.f32.mrf.mxu0
    %v450 = vadd.f32 %v411, %v449
    %451 = vmatmul.bf16.gmra.mxu0 %v372
    %v452 = vpop.f32.mrf.mxu0
    %v453 = vadd.f32 %v414, %v452
    %v454 = vpop.f32.mrf.mxu0
    %v455 = vadd.f32 %v416, %v454
    %456 = vmatmul.bf16.gmra.mxu0 %v375
    %v457 = vpop.f32.mrf.mxu0
    %v458 = vadd.f32 %v419, %v457
    %v459 = vpop.f32.mrf.mxu0
    %v460 = vadd.f32 %v421, %v459
    %461 = vmatmul.bf16.gmra.mxu0 %v378
    %v462 = vpop.f32.mrf.mxu0
    %v463 = vadd.f32 %v424, %v462
    %v464 = vpop.f32.mrf.mxu0
    %v465 = vadd.f32 %v426, %v464
    %466 = vmatmul.bf16.gmra.mxu0 %v381
    %v467 = vpop.f32.mrf.mxu0
    %v468 = vadd.f32 %v429, %v467
    %v469 = vpop.f32.mrf.mxu0
    %v470 = vadd.f32 %v431, %v469
    %471 = vmatmul.bf16.gmra.mxu0 %v384
    %v472 = vpop.f32.mrf.mxu0
    %v473 = vadd.f32 %v434, %v472
    %v474 = vpop.f32.mrf.mxu0
    %v475 = vadd.f32 %v436, %v474
    %476 = vdwg.mxu0
    %477 = vmatpush.bf16.msra.mxu0 %v312
    %478 = vmatpush.bf16.msra.mxu0 %v308
    %479 = vmatpush.bf16.msra.mxu0 %v304
    %480 = vmatpush.bf16.msra.mxu0 %v300
    %481 = vmatpush.bf16.msra.mxu0 %v296
    %482 = vmatpush.bf16.msra.mxu0 %v292
    %483 = vmatpush.bf16.msra.mxu0 %v288
    %484 = vmatpush.bf16.msra.mxu0 %v284
    %485 = vmatmul.bf16.gmra.mxu0 %v139
    %v486 = vpop.f32.mrf.mxu0
    %v487 = vadd.f32 0.0, %v486
    %v488 = vpop.f32.mrf.mxu0
    %v489 = vadd.f32 0.0, %v488
    %490 = vmatmul.bf16.gmra.mxu0 %v141
    %v491 = vpop.f32.mrf.mxu0
    %v492 = vadd.f32 0.0, %v491
    %v493 = vpop.f32.mrf.mxu0
    %v494 = vadd.f32 0.0, %v493
    %495 = vmatmul.bf16.gmra.mxu0 %v143
    %v496 = vpop.f32.mrf.mxu0
    %v497 = vadd.f32 0.0, %v496
    %v498 = vpop.f32.mrf.mxu0
    %v499 = vadd.f32 0.0, %v498
    %500 = vmatmul.bf16.gmra.mxu0 %v145
    %v501 = vpop.f32.mrf.mxu0
    %v502 = vadd.f32 0.0, %v501
    %v503 = vpop.f32.mrf.mxu0
    %v504 = vadd.f32 0.0, %v503
    %505 = vmatmul.bf16.gmra.mxu0 %v147
    %v506 = vpop.f32.mrf.mxu0
    %v507 = vadd.f32 0.0, %v506
    %v508 = vpop.f32.mrf.mxu0
    %v509 = vadd.f32 0.0, %v508
    %510 = vmatmul.bf16.gmra.mxu0 %v149
    %v511 = vpop.f32.mrf.mxu0
    %v512 = vadd.f32 0.0, %v511
    %v513 = vpop.f32.mrf.mxu0
    %v514 = vadd.f32 0.0, %v513
    %515 = vdwg.mxu0
    %516 = vmatpush.bf16.msra.mxu0 0
    %517 = vmatpush.bf16.msra.mxu0 0
    %518 = vmatpush.bf16.msra.mxu0 0
    %519 = vmatpush.bf16.msra.mxu0 0
    %520 = vmatpush.bf16.msra.mxu0 0
    %521 = vmatpush.bf16.msra.mxu0 %v391
    %522 = vmatpush.bf16.msra.mxu0 %v320
    %523 = vmatpush.bf16.msra.mxu0 %v316
    %524 = vmatmul.bf16.gmra.mxu0 %v369
    %v525 = vpop.f32.mrf.mxu0
    %v526 = vadd.f32 %v487, %v525
    %v527 = vpop.f32.mrf.mxu0
    %v528 = vadd.f32 %v489, %v527
    %529 = vmatmul.bf16.gmra.mxu0 %v372
    %v530 = vpop.f32.mrf.mxu0
    %v531 = vadd.f32 %v492, %v530
    %v532 = vpop.f32.mrf.mxu0
    %v533 = vadd.f32 %v494, %v532
    %534 = vmatmul.bf16.gmra.mxu0 %v375
    %v535 = vpop.f32.mrf.mxu0
    %v536 = vadd.f32 %v497, %v535
    %v537 = vpop.f32.mrf.mxu0
    %v538 = vadd.f32 %v499, %v537
    %539 = vmatmul.bf16.gmra.mxu0 %v378
    %v540 = vpop.f32.mrf.mxu0
    %v541 = vadd.f32 %v502, %v540
    %v542 = vpop.f32.mrf.mxu0
    %v543 = vadd.f32 %v504, %v542
    %544 = vmatmul.bf16.gmra.mxu0 %v381
    %v545 = vpop.f32.mrf.mxu0
    %v546 = vadd.f32 %v507, %v545
    %v547 = vpop.f32.mrf.mxu0
    %v548 = vadd.f32 %v509, %v547
    %549 = vmatmul.bf16.gmra.mxu0 %v384
    %v550 = vpop.f32.mrf.mxu0
    %v551 = vadd.f32 %v512, %v550
    %v552 = vpop.f32.mrf.mxu0
    %v553 = vadd.f32 %v514, %v552
    %554 = vdwg.mxu0
    %555 = vmatpush.bf16.msra.mxu0 %v313
    %556 = vmatpush.bf16.msra.mxu0 %v309
    %557 = vmatpush.bf16.msra.mxu0 %v305
    %558 = vmatpush.bf16.msra.mxu0 %v301
    %559 = vmatpush.bf16.msra.mxu0 %v297
    %560 = vmatpush.bf16.msra.mxu0 %v293
    %561 = vmatpush.bf16.msra.mxu0 %v289
    %562 = vmatpush.bf16.msra.mxu0 %v285
    %563 = vmatmul.bf16.gmra.mxu0 %v139
    %v564 = vpop.f32.mrf.mxu0
    %v565 = vadd.f32 0.0, %v564
    %v566 = vpop.f32.mrf.mxu0
    %v567 = vadd.f32 0.0, %v566
    %568 = vmatmul.bf16.gmra.mxu0 %v141
    %v569 = vpop.f32.mrf.mxu0
    %v570 = vadd.f32 0.0, %v569
    %v571 = vpop.f32.mrf.mxu0
    %v572 = vadd.f32 0.0, %v571
    %573 = vmatmul.bf16.gmra.mxu0 %v143
    %v574 = vpop.f32.mrf.mxu0
    %v575 = vadd.f32 0.0, %v574
    %v576 = vpop.f32.mrf.mxu0
    %v577 = vadd.f32 0.0, %v576
    %578 = vmatmul.bf16.gmra.mxu0 %v145
    %v579 = vpop.f32.mrf.mxu0
    %v580 = vadd.f32 0.0, %v579
    %v581 = vpop.f32.mrf.mxu0
    %v582 = vadd.f32 0.0, %v581
    %583 = vmatmul.bf16.gmra.mxu0 %v147
    %v584 = vpop.f32.mrf.mxu0
    %v585 = vadd.f32 0.0, %v584
    %v586 = vpop.f32.mrf.mxu0
    %v587 = vadd.f32 0.0, %v586
    %588 = vmatmul.bf16.gmra.mxu0 %v149
    %v589 = vpop.f32.mrf.mxu0
    %v590 = vadd.f32 0.0, %v589
    %v591 = vpop.f32.mrf.mxu0
    %v592 = vadd.f32 0.0, %v591
    %593 = vdwg.mxu0
    %594 = vmatpush.bf16.msra.mxu0 0
    %595 = vmatpush.bf16.msra.mxu0 0
    %596 = vmatpush.bf16.msra.mxu0 0
    %597 = vmatpush.bf16.msra.mxu0 0
    %598 = vmatpush.bf16.msra.mxu0 0
    %599 = vmatpush.bf16.msra.mxu0 %v394
    %600 = vmatpush.bf16.msra.mxu0 %v321
    %601 = vmatpush.bf16.msra.mxu0 %v317
    %602 = vmatmul.bf16.gmra.mxu0 %v369
    %v603 = vpop.f32.mrf.mxu0
    %v604 = vadd.f32 %v565, %v603
    %v605 = vpop.f32.mrf.mxu0
    %v606 = vadd.f32 %v567, %v605
    %607 = vmatmul.bf16.gmra.mxu0 %v372
    %v608 = vpop.f32.mrf.mxu0
    %v609 = vadd.f32 %v570, %v608
    %v610 = vpop.f32.mrf.mxu0
    %v611 = vadd.f32 %v572, %v610
    %612 = vmatmul.bf16.gmra.mxu0 %v375
    %v613 = vpop.f32.mrf.mxu0
    %v614 = vadd.f32 %v575, %v613
    %v615 = vpop.f32.mrf.mxu0
    %v616 = vadd.f32 %v577, %v615
    %617 = vmatmul.bf16.gmra.mxu0 %v378
    %v618 = vpop.f32.mrf.mxu0
    %v619 = vadd.f32 %v580, %v618
    %v620 = vpop.f32.mrf.mxu0
    %v621 = vadd.f32 %v582, %v620
    %622 = vmatmul.bf16.gmra.mxu0 %v381
    %v623 = vpop.f32.mrf.mxu0
    %v624 = vadd.f32 %v585, %v623
    %v625 = vpop.f32.mrf.mxu0
    %v626 = vadd.f32 %v587, %v625
    %627 = vmatmul.bf16.gmra.mxu0 %v384
    %v628 = vpop.f32.mrf.mxu0
    %v629 = vadd.f32 %v590, %v628
    %v630 = vpop.f32.mrf.mxu0
    %v631 = vadd.f32 %v592, %v630
    %632 = vdwg.mxu0
    %633 = vmatpush.bf16.msra.mxu0 %v314
    %634 = vmatpush.bf16.msra.mxu0 %v310
    %635 = vmatpush.bf16.msra.mxu0 %v306
    %636 = vmatpush.bf16.msra.mxu0 %v302
    %637 = vmatpush.bf16.msra.mxu0 %v298
    %638 = vmatpush.bf16.msra.mxu0 %v294
    %639 = vmatpush.bf16.msra.mxu0 %v290
    %640 = vmatpush.bf16.msra.mxu0 %v286
    %641 = vmatmul.bf16.gmra.mxu0 %v139
    %v642 = vpop.f32.mrf.mxu0
    %v643 = vadd.f32 0.0, %v642
    %v644 = vpop.f32.mrf.mxu0
    %v645 = vadd.f32 0.0, %v644
    %646 = vmatmul.bf16.gmra.mxu0 %v141
    %v647 = vpop.f32.mrf.mxu0
    %v648 = vadd.f32 0.0, %v647
    %v649 = vpop.f32.mrf.mxu0
    %v650 = vadd.f32 0.0, %v649
    %651 = vmatmul.bf16.gmra.mxu0 %v143
    %v652 = vpop.f32.mrf.mxu0
    %v653 = vadd.f32 0.0, %v652
    %v654 = vpop.f32.mrf.mxu0
    %v655 = vadd.f32 0.0, %v654
    %656 = vmatmul.bf16.gmra.mxu0 %v145
    %v657 = vpop.f32.mrf.mxu0
    %v658 = vadd.f32 0.0, %v657
    %v659 = vpop.f32.mrf.mxu0
    %v660 = vadd.f32 0.0, %v659
    %661 = vmatmul.bf16.gmra.mxu0 %v147
    %v662 = vpop.f32.mrf.mxu0
    %v663 = vadd.f32 0.0, %v662
    %v664 = vpop.f32.mrf.mxu0
    %v665 = vadd.f32 0.0, %v664
    %666 = vmatmul.bf16.gmra.mxu0 %v149
    %v667 = vpop.f32.mrf.mxu0
    %v668 = vadd.f32 0.0, %v667
    %v669 = vpop.f32.mrf.mxu0
    %v670 = vadd.f32 0.0, %v669
    %671 = vdwg.mxu0
    %672 = vmatpush.bf16.msra.mxu0 0
    %673 = vmatpush.bf16.msra.mxu0 0
    %674 = vmatpush.bf16.msra.mxu0 0
    %675 = vmatpush.bf16.msra.mxu0 0
    %676 = vmatpush.bf16.msra.mxu0 0
    %677 = vmatpush.bf16.msra.mxu0 %v397
    %678 = vmatpush.bf16.msra.mxu0 %v322
    %679 = vmatpush.bf16.msra.mxu0 %v318
    %680 = vmatmul.bf16.gmra.mxu0 %v369
    %v681 = vpop.f32.mrf.mxu0
    %v682 = vadd.f32 %v643, %v681
    %v683 = vpop.f32.mrf.mxu0
    %v684 = vadd.f32 %v645, %v683
    %685 = vmatmul.bf16.gmra.mxu0 %v372
    %v686 = vpop.f32.mrf.mxu0
    %v687 = vadd.f32 %v648, %v686
    %v688 = vpop.f32.mrf.mxu0
    %v689 = vadd.f32 %v650, %v688
    %690 = vmatmul.bf16.gmra.mxu0 %v375
    %v691 = vpop.f32.mrf.mxu0
    %v692 = vadd.f32 %v653, %v691
    %v693 = vpop.f32.mrf.mxu0
    %v694 = vadd.f32 %v655, %v693
    %695 = vmatmul.bf16.gmra.mxu0 %v378
    %v696 = vpop.f32.mrf.mxu0
    %v697 = vadd.f32 %v658, %v696
    %v698 = vpop.f32.mrf.mxu0
    %v699 = vadd.f32 %v660, %v698
    %700 = vmatmul.bf16.gmra.mxu0 %v381
    %v701 = vpop.f32.mrf.mxu0
    %v702 = vadd.f32 %v663, %v701
    %v703 = vpop.f32.mrf.mxu0
    %v704 = vadd.f32 %v665, %v703
    %705 = vmatmul.bf16.gmra.mxu0 %v384
    %v706 = vpop.f32.mrf.mxu0
    %v707 = vadd.f32 %v668, %v706
    %v708 = vpop.f32.mrf.mxu0
    %v709 = vadd.f32 %v670, %v708
    %710 = vdwg.mxu0
    %v711 = vmax.f32 %v448, %v604
    %v712 = vmax.f32 %v526, %v682
    %v713 = vmax.f32 %v450, %v606
    %v714 = vmax.f32 %v528, %v684
    %v715 = vmax.f32 %v453, %v609
    %v716 = vmax.f32 %v531, %v687
    %v717 = vmax.f32 %v455, %v611
    %v718 = vmax.f32 %v533, %v689
    %v719 = vmax.f32 %v458, %v614
    %v720 = vmax.f32 %v536, %v692
    %v721 = vmax.f32 %v460, %v616
    %v722 = vmax.f32 %v538, %v694
    %v723 = vmax.f32 %v463, %v619
    %v724 = vmax.f32 %v541, %v697
    %v725 = vmax.f32 %v465, %v621
    %v726 = vmax.f32 %v543, %v699
    %v727 = vmax.f32 %v468, %v624
    %v728 = vmax.f32 %v546, %v702
    %v729 = vmax.f32 %v470, %v626
    %v730 = vmax.f32 %v548, %v704
    %v731 = vmax.f32 %v473, %v629
    %v732 = vmax.f32 %v551, %v707
    %v733 = vmax.f32 %v475, %v631
    %v734 = vmax.f32 %v553, %v709
    %v735 = vmax.f32 %v711, %v712
    %v736 = vmax.f32 %v713, %v714
    %v737 = vmax.f32 %v715, %v716
    %v738 = vmax.f32 %v717, %v718
    %v739 = vmax.f32 %v719, %v720
    %v740 = vmax.f32 %v721, %v722
    %v741 = vmax.f32 %v723, %v724
    %v742 = vmax.f32 %v725, %v726
    %v743 = vmax.f32 %v727, %v728
    %v744 = vmax.f32 %v729, %v730
    %v745 = vmax.f32 %v731, %v732
    %v746 = vmax.f32 %v733, %v734
    %v747 = vld [vmem:[%s2] sm:$0x1]
    %v749 = vperm.slane %v747, 0
    %v751 = vadd.f32 %v735, %v749
    %v752 = vadd.f32 %v736, %v749
    %v753 = vadd.f32 %v737, %v749
    %v754 = vadd.f32 %v738, %v749
    %v755 = vadd.f32 %v739, %v749
    %v756 = vadd.f32 %v740, %v749
    %v757 = vadd.f32 %v741, %v749
    %v758 = vadd.f32 %v742, %v749
    %v759 = vadd.f32 %v743, %v749
    %v760 = vadd.f32 %v744, %v749
    %v761 = vadd.f32 %v745, %v749
    %v762 = vadd.f32 %v746, %v749
    %v763 = vmax.f32 %v751, 0.0
    %v764 = vmax.f32 %v752, 0.0
    %v765 = vmax.f32 %v753, 0.0
    %v766 = vmax.f32 %v754, 0.0
    %v767 = vmax.f32 %v755, 0.0
    %v768 = vmax.f32 %v756, 0.0
    %v769 = vmax.f32 %v757, 0.0
    %v770 = vmax.f32 %v758, 0.0
    %v771 = vmax.f32 %v759, 0.0
    %v772 = vmax.f32 %v760, 0.0
    %v773 = vmax.f32 %v761, 0.0
    %v774 = vmax.f32 %v762, 0.0
    %v775 = vpack.c.bf16 %v763, %v763
    %v776 = vpack.c.bf16 %v764, %v764
    %v777 = vpack.c.bf16 %v765, %v765
    %v778 = vpack.c.bf16 %v766, %v766
    %v779 = vpack.c.bf16 %v767, %v767
    %v780 = vpack.c.bf16 %v768, %v768
    %v781 = vpack.c.bf16 %v769, %v769
    %v782 = vpack.c.bf16 %v770, %v770
    %v783 = vpack.c.bf16 %v771, %v771
    %v784 = vpack.c.bf16 %v772, %v772
    %v785 = vpack.c.bf16 %v773, %v773
    %v786 = vpack.c.bf16 %v774, %v774
    %v793 = vrot.slane %v777, 4
    %v794 = vrot.slane %v778, 4
    %v795 = vrot.slane %v779, 4
    %v796 = vrot.slane %v780, 4
    %v797 = vrot.slane %v781, 4
    %v798 = vrot.slane %v782, 4
    %v803 = vrot.slane %v783, 4
    %v804 = vrot.slane %v784, 4
    %v805 = vrot.slane %v785, 4
    %v806 = vrot.slane %v786, 4
    %v809 = vsel %vm386, %v775, %v793
    %v813 = vsel %vm386, %v776, %v794
    %v817 = vsel %vm386, %v777, %v795
    %v821 = vsel %vm386, %v778, %v796
    %v825 = vsel %vm386, %v779, %v797
    %v829 = vsel %vm386, %v780, %v798
    %v833 = vsel %vm386, %v781, %v803
    %v837 = vsel %vm386, %v782, %v804
    %v841 = vsel %vm386, %v783, %v805
    %v845 = vsel %vm386, %v784, %v806
    %v847 = vld [vmem:[#allocation2] sm:$0xff]
    %v848 = vld [vmem:[#allocation2 + $0x8] sm:$0xff]
    %v849 = vld [vmem:[#allocation2 + $0x10] sm:$0xff]
    %v850 = vld [vmem:[#allocation2 + $0x18] sm:$0xff]
    %v851 = vld [vmem:[#allocation2 + $0x20] sm:$0xff]
    %v852 = vld [vmem:[#allocation2 + $0x28] sm:$0xff]
    %v853 = vld [vmem:[#allocation2 + $0x30] sm:$0xff]
    %v854 = vld [vmem:[#allocation2 + $0x38] sm:$0xff]
    %v855 = vld [vmem:[#allocation2 + $0x40] sm:$0xff]
    %v856 = vld [vmem:[#allocation2 + $0x48] sm:$0xff]
    %v857 = vld [vmem:[#allocation2 + $0x50] sm:$0xff]
    %v858 = vld [vmem:[#allocation2 + $0x58] sm:$0xff]
    %v859 = vld [vmem:[#allocation2 + $0x60] sm:$0xff]
    %v860 = vld [vmem:[#allocation2 + $0x68] sm:$0xff]
    %v861 = vld [vmem:[#allocation2 + $0x70] sm:$0xff]
    %v862 = vld [vmem:[#allocation2 + $0x78] sm:$0xff]
    %v863 = vld [vmem:[#allocation2 + $0x80] sm:$0xff]
    %v864 = vld [vmem:[#allocation2 + $0x88] sm:$0xff]
    %v865 = vld [vmem:[#allocation2 + $0x90] sm:$0xff]
    %v866 = vld [vmem:[#allocation2 + $0x98] sm:$0xff]
    %v867 = vld [vmem:[#allocation2 + $0xa0] sm:$0xff]
    %v868 = vld [vmem:[#allocation2 + $0xa8] sm:$0xff]
    %v869 = vld [vmem:[#allocation2 + $0xb0] sm:$0xff]
    %v870 = vld [vmem:[#allocation2 + $0xb8] sm:$0xff]
    %v871 = vld [vmem:[#allocation2 + $0xc0] sm:$0xff]
    %v872 = vld [vmem:[#allocation2 + $0xc8] sm:$0xff]
    %v873 = vld [vmem:[#allocation2 + $0xd0] sm:$0xff]
    %v874 = vld [vmem:[#allocation2 + $0xd8] sm:$0xff]
    %v875 = vld [vmem:[#allocation2 + $0xe0] sm:$0xff]
    %v876 = vld [vmem:[#allocation2 + $0xe8] sm:$0xff]
    %v877 = vld [vmem:[#allocation2 + $0xf0] sm:$0xff]
    %v878 = vld [vmem:[#allocation2 + $0xf8] sm:$0xff]
    %v879 = vld [vmem:[#allocation2 + $0x100] sm:$0xff]
    %v880 = vld [vmem:[#allocation2 + $0x108] sm:$0xff]
    %v881 = vld [vmem:[#allocation2 + $0x110] sm:$0xff]
    %v882 = vld [vmem:[#allocation2 + $0x118] sm:$0xff]
    %v883 = vld [vmem:[#allocation2 + $0x120] sm:$0xff]
    %v884 = vld [vmem:[#allocation2 + $0x128] sm:$0xff]
    %v885 = vld [vmem:[#allocation2 + $0x130] sm:$0xff]
    %v886 = vld [vmem:[#allocation2 + $0x138] sm:$0xff]
    %v887 = vld [vmem:[#allocation2 + $0x140] sm:$0xff]
    %v888 = vld [vmem:[#allocation2 + $0x148] sm:$0xff]
    %v889 = vld [vmem:[#allocation2 + $0x150] sm:$0xff]
    %v890 = vld [vmem:[#allocation2 + $0x158] sm:$0xff]
    %v891 = vld [vmem:[#allocation2 + $0x160] sm:$0xff]
    %v892 = vld [vmem:[#allocation2 + $0x168] sm:$0xff]
    %v893 = vld [vmem:[#allocation2 + $0x170] sm:$0xff]
    %v894 = vld [vmem:[#allocation2 + $0x178] sm:$0xff]
    %v895 = vld [vmem:[#allocation2 + $0x180] sm:$0xff]
    %v896 = vld [vmem:[#allocation2 + $0x188] sm:$0xff]
    %v897 = vld [vmem:[#allocation2 + $0x190] sm:$0xff]
    %v898 = vld [vmem:[#allocation2 + $0x198] sm:$0xff]
    %v899 = vld [vmem:[#allocation2 + $0x1a0] sm:$0xff]
    %v900 = vld [vmem:[#allocation2 + $0x1a8] sm:$0xff]
    %v901 = vld [vmem:[#allocation2 + $0x1b0] sm:$0xff]
    %v902 = vld [vmem:[#allocation2 + $0x1b8] sm:$0xff]
    %v903 = vld [vmem:[#allocation2 + $0x1c0] sm:$0xff]
    %v904 = vld [vmem:[#allocation2 + $0x1c8] sm:$0xff]
    %v905 = vld [vmem:[#allocation2 + $0x1d0] sm:$0xff]
    %v906 = vld [vmem:[#allocation2 + $0x1d8] sm:$0xff]
    %v907 = vld [vmem:[#allocation2 + $0x1e0] sm:$0xff]
    %v908 = vld [vmem:[#allocation2 + $0x1e8] sm:$0xff]
    %v909 = vld [vmem:[#allocation2 + $0x1f0] sm:$0xff]
    %v910 = vld [vmem:[#allocation2 + $0x1f8] sm:$0xff]
    %v911 = vld [vmem:[#allocation2 + $0x200] sm:$0xff]
    %v912 = vld [vmem:[#allocation2 + $0x208] sm:$0xff]
    %v913 = vld [vmem:[#allocation2 + $0x210] sm:$0xff]
    %v914 = vld [vmem:[#allocation2 + $0x218] sm:$0xff]
    %v915 = vld [vmem:[#allocation2 + $0x220] sm:$0xff]
    %v916 = vld [vmem:[#allocation2 + $0x228] sm:$0xff]
    %v917 = vld [vmem:[#allocation2 + $0x230] sm:$0xff]
    %v918 = vld [vmem:[#allocation2 + $0x238] sm:$0xff]
    %v919 = vld [vmem:[#allocation2 + $0x240] sm:$0xff]
    %v920 = vld [vmem:[#allocation2 + $0x248] sm:$0xff]
    %v921 = vld [vmem:[#allocation2 + $0x250] sm:$0xff]
    %v922 = vld [vmem:[#allocation2 + $0x258] sm:$0xff]
    %v923 = vld [vmem:[#allocation2 + $0x260] sm:$0xff]
    %v924 = vld [vmem:[#allocation2 + $0x268] sm:$0xff]
    %v925 = vld [vmem:[#allocation2 + $0x270] sm:$0xff]
    %v926 = vld [vmem:[#allocation2 + $0x278] sm:$0xff]
    %v927 = vld [vmem:[#allocation2 + $0x280] sm:$0xff]
    %v928 = vld [vmem:[#allocation2 + $0x288] sm:$0xff]
    %v929 = vld [vmem:[#allocation2 + $0x290] sm:$0xff]
    %v930 = vld [vmem:[#allocation2 + $0x298] sm:$0xff]
    %v931 = vld [vmem:[#allocation2 + $0x2a0] sm:$0xff]
    %v932 = vld [vmem:[#allocation2 + $0x2a8] sm:$0xff]
    %v933 = vld [vmem:[#allocation2 + $0x2b0] sm:$0xff]
    %v934 = vld [vmem:[#allocation2 + $0x2b8] sm:$0xff]
    %v935 = vld [vmem:[#allocation2 + $0x2c0] sm:$0xff]
    %v936 = vld [vmem:[#allocation2 + $0x2c8] sm:$0xff]
    %v937 = vld [vmem:[#allocation2 + $0x2d0] sm:$0xff]
    %v938 = vld [vmem:[#allocation2 + $0x2d8] sm:$0xff]
    %v939 = vld [vmem:[#allocation2 + $0x2e0] sm:$0xff]
    %v940 = vld [vmem:[#allocation2 + $0x2e8] sm:$0xff]
    %v941 = vld [vmem:[#allocation2 + $0x2f0] sm:$0xff]
    %v942 = vld [vmem:[#allocation2 + $0x2f8] sm:$0xff]
    %v943 = vld [vmem:[#allocation2 + $0x300] sm:$0xff]
    %v944 = vld [vmem:[#allocation2 + $0x308] sm:$0xff]
    %v945 = vld [vmem:[#allocation2 + $0x310] sm:$0xff]
    %v946 = vld [vmem:[#allocation2 + $0x318] sm:$0xff]
    %v947 = vld [vmem:[#allocation2 + $0x320] sm:$0xff]
    %v948 = vld [vmem:[#allocation2 + $0x328] sm:$0xff]
    %v949 = vld [vmem:[#allocation2 + $0x330] sm:$0xff]
    %v950 = vld [vmem:[#allocation2 + $0x338] sm:$0xff]
    %v951 = vld [vmem:[#allocation2 + $0x340] sm:$0xff]
    %v952 = vld [vmem:[#allocation2 + $0x348] sm:$0xff]
    %v953 = vld [vmem:[#allocation2 + $0x350] sm:$0xff]
    %v954 = vld [vmem:[#allocation2 + $0x358] sm:$0xff]
    %v955 = vld [vmem:[#allocation2 + $0x360] sm:$0xff]
    %v956 = vld [vmem:[#allocation2 + $0x368] sm:$0xff]
    %v957 = vld [vmem:[#allocation2 + $0x370] sm:$0xff]
    %v958 = vld [vmem:[#allocation2 + $0x378] sm:$0xff]
    %v959 = vld [vmem:[#allocation2 + $0x380] sm:$0xff]
    %v960 = vld [vmem:[#allocation2 + $0x388] sm:$0xff]
    %v961 = vld [vmem:[#allocation2 + $0x390] sm:$0xff]
    %v962 = vld [vmem:[#allocation2 + $0x398] sm:$0xff]
    %v963 = vld [vmem:[#allocation2 + $0x3a0] sm:$0xff]
    %v964 = vld [vmem:[#allocation2 + $0x3a8] sm:$0xff]
    %v965 = vld [vmem:[#allocation2 + $0x3b0] sm:$0xff]
    %v966 = vld [vmem:[#allocation2 + $0x3b8] sm:$0xff]
    %v967 = vld [vmem:[#allocation2 + $0x3c0] sm:$0xff]
    %v968 = vld [vmem:[#allocation2 + $0x3c8] sm:$0xff]
    %v969 = vld [vmem:[#allocation2 + $0x3d0] sm:$0xff]
    %v970 = vld [vmem:[#allocation2 + $0x3d8] sm:$0xff]
    %v971 = vld [vmem:[#allocation2 + $0x3e0] sm:$0xff]
    %v972 = vld [vmem:[#allocation2 + $0x3e8] sm:$0xff]
    %v973 = vld [vmem:[#allocation2 + $0x3f0] sm:$0xff]
    %v974 = vld [vmem:[#allocation2 + $0x3f8] sm:$0xff]
    %v975 = vld [vmem:[#allocation2 + $0x400] sm:$0xff]
    %v976 = vld [vmem:[#allocation2 + $0x408] sm:$0xff]
    %v977 = vld [vmem:[#allocation2 + $0x410] sm:$0xff]
    %v978 = vld [vmem:[#allocation2 + $0x418] sm:$0xff]
    %v979 = vld [vmem:[#allocation2 + $0x420] sm:$0xff]
    %v980 = vld [vmem:[#allocation2 + $0x428] sm:$0xff]
    %v981 = vld [vmem:[#allocation2 + $0x430] sm:$0xff]
    %v982 = vld [vmem:[#allocation2 + $0x438] sm:$0xff]
    %v983 = vld [vmem:[#allocation2 + $0x440] sm:$0xff]
    %v984 = vld [vmem:[#allocation2 + $0x448] sm:$0xff]
    %v985 = vld [vmem:[#allocation2 + $0x450] sm:$0xff]
    %v986 = vld [vmem:[#allocation2 + $0x458] sm:$0xff]
    %v987 = vld [vmem:[#allocation2 + $0x460] sm:$0xff]
    %v988 = vld [vmem:[#allocation2 + $0x468] sm:$0xff]
    %v989 = vld [vmem:[#allocation2 + $0x470] sm:$0xff]
    %v990 = vld [vmem:[#allocation2 + $0x478] sm:$0xff]
    %v991 = vld [vmem:[#allocation2 + $0x480] sm:$0xff]
    %v992 = vld [vmem:[#allocation2 + $0x488] sm:$0xff]
    %v993 = vld [vmem:[#allocation2 + $0x490] sm:$0xff]
    %v994 = vld [vmem:[#allocation2 + $0x498] sm:$0xff]
    %v995 = vld [vmem:[#allocation2 + $0x4a0] sm:$0xff]
    %v996 = vld [vmem:[#allocation2 + $0x4a8] sm:$0xff]
    %v997 = vld [vmem:[#allocation2 + $0x4b0] sm:$0xff]
    %v998 = vld [vmem:[#allocation2 + $0x4b8] sm:$0xff]
    %v999 = vld [vmem:[#allocation2 + $0x4c0] sm:$0xff]
    %v1000 = vld [vmem:[#allocation2 + $0x4c8] sm:$0xff]
    %v1001 = vld [vmem:[#allocation2 + $0x4d0] sm:$0xff]
    %v1002 = vld [vmem:[#allocation2 + $0x4d8] sm:$0xff]
    %v1003 = vld [vmem:[#allocation2 + $0x4e0] sm:$0xff]
    %v1004 = vld [vmem:[#allocation2 + $0x4e8] sm:$0xff]
    %v1005 = vld [vmem:[#allocation2 + $0x4f0] sm:$0xff]
    %v1006 = vld [vmem:[#allocation2 + $0x4f8] sm:$0xff]
    %v1007 = vld [vmem:[#allocation2 + $0x500] sm:$0xff]
    %v1008 = vld [vmem:[#allocation2 + $0x508] sm:$0xff]
    %v1009 = vld [vmem:[#allocation2 + $0x510] sm:$0xff]
    %v1010 = vld [vmem:[#allocation2 + $0x518] sm:$0xff]
    %v1011 = vld [vmem:[#allocation2 + $0x520] sm:$0xff]
    %v1012 = vld [vmem:[#allocation2 + $0x528] sm:$0xff]
    %v1013 = vld [vmem:[#allocation2 + $0x530] sm:$0xff]
    %v1014 = vld [vmem:[#allocation2 + $0x538] sm:$0xff]
    %v1015 = vld [vmem:[#allocation2 + $0x540] sm:$0xff]
    %v1016 = vld [vmem:[#allocation2 + $0x548] sm:$0xff]
    %v1017 = vld [vmem:[#allocation2 + $0x550] sm:$0xff]
    %v1018 = vld [vmem:[#allocation2 + $0x558] sm:$0xff]
    %v1019 = vld [vmem:[#allocation2 + $0x560] sm:$0xff]
    %v1020 = vld [vmem:[#allocation2 + $0x568] sm:$0xff]
    %v1021 = vld [vmem:[#allocation2 + $0x570] sm:$0xff]
    %v1022 = vld [vmem:[#allocation2 + $0x578] sm:$0xff]
    %v1023 = vld [vmem:[#allocation2 + $0x580] sm:$0xff]
    %v1024 = vld [vmem:[#allocation2 + $0x588] sm:$0xff]
    %v1025 = vld [vmem:[#allocation2 + $0x590] sm:$0xff]
    %v1026 = vld [vmem:[#allocation2 + $0x598] sm:$0xff]
    %v1027 = vld [vmem:[#allocation2 + $0x5a0] sm:$0xff]
    %v1028 = vld [vmem:[#allocation2 + $0x5a8] sm:$0xff]
    %v1029 = vld [vmem:[#allocation2 + $0x5b0] sm:$0xff]
    %v1030 = vld [vmem:[#allocation2 + $0x5b8] sm:$0xff]
    %v1031 = vld [vmem:[#allocation2 + $0x5c0] sm:$0xff]
    %v1032 = vld [vmem:[#allocation2 + $0x5c8] sm:$0xff]
    %v1033 = vld [vmem:[#allocation2 + $0x5d0] sm:$0xff]
    %v1034 = vld [vmem:[#allocation2 + $0x5d8] sm:$0xff]
    %v1035 = vld [vmem:[#allocation2 + $0x5e0] sm:$0xff]
    %v1036 = vld [vmem:[#allocation2 + $0x5e8] sm:$0xff]
    %v1037 = vld [vmem:[#allocation2 + $0x5f0] sm:$0xff]
    %v1038 = vld [vmem:[#allocation2 + $0x5f8] sm:$0xff]
    %v1231 = vunpack.c.l.b16 %v847
    %v1232 = vunpack.c.h.b16 %v847
    %v1233 = vunpack.c.l.b16 %v848
    %v1234 = vunpack.c.h.b16 %v848
    %v1235 = vunpack.c.l.b16 %v849
    %v1236 = vunpack.c.h.b16 %v849
    %v1237 = vunpack.c.l.b16 %v850
    %v1238 = vunpack.c.h.b16 %v850
    %v1239 = vunpack.c.l.b16 %v851
    %v1240 = vunpack.c.h.b16 %v851
    %v1241 = vunpack.c.l.b16 %v852
    %v1242 = vunpack.c.h.b16 %v852
    %v1243 = vunpack.c.l.b16 %v853
    %v1244 = vunpack.c.h.b16 %v853
    %v1245 = vunpack.c.l.b16 %v854
    %v1246 = vunpack.c.h.b16 %v854
    %v1247 = vunpack.c.l.b16 %v855
    %v1248 = vunpack.c.h.b16 %v855
    %v1249 = vunpack.c.l.b16 %v856
    %v1250 = vunpack.c.h.b16 %v856
    %v1251 = vunpack.c.l.b16 %v857
    %v1252 = vunpack.c.h.b16 %v857
    %v1253 = vunpack.c.l.b16 %v858
    %v1254 = vunpack.c.h.b16 %v858
    %v1255 = vunpack.c.l.b16 %v859
    %v1256 = vunpack.c.h.b16 %v859
    %v1257 = vunpack.c.l.b16 %v860
    %v1258 = vunpack.c.h.b16 %v860
    %v1259 = vunpack.c.l.b16 %v861
    %v1260 = vunpack.c.h.b16 %v861
    %v1261 = vunpack.c.l.b16 %v862
    %v1262 = vunpack.c.h.b16 %v862
    %v1263 = vunpack.c.l.b16 %v863
    %v1264 = vunpack.c.h.b16 %v863
    %v1265 = vunpack.c.l.b16 %v864
    %v1266 = vunpack.c.h.b16 %v864
    %v1267 = vunpack.c.l.b16 %v865
    %v1268 = vunpack.c.h.b16 %v865
    %v1269 = vunpack.c.l.b16 %v866
    %v1270 = vunpack.c.h.b16 %v866
    %v1271 = vunpack.c.l.b16 %v867
    %v1272 = vunpack.c.h.b16 %v867
    %v1273 = vunpack.c.l.b16 %v868
    %v1274 = vunpack.c.h.b16 %v868
    %v1275 = vunpack.c.l.b16 %v869
    %v1276 = vunpack.c.h.b16 %v869
    %v1277 = vunpack.c.l.b16 %v870
    %v1278 = vunpack.c.h.b16 %v870
    %v1279 = vunpack.c.l.b16 %v871
    %v1280 = vunpack.c.h.b16 %v871
    %v1281 = vunpack.c.l.b16 %v872
    %v1282 = vunpack.c.h.b16 %v872
    %v1283 = vunpack.c.l.b16 %v873
    %v1284 = vunpack.c.h.b16 %v873
    %v1285 = vunpack.c.l.b16 %v874
    %v1286 = vunpack.c.h.b16 %v874
    %v1287 = vunpack.c.l.b16 %v875
    %v1288 = vunpack.c.h.b16 %v875
    %v1289 = vunpack.c.l.b16 %v876
    %v1290 = vunpack.c.h.b16 %v876
    %v1291 = vunpack.c.l.b16 %v877
    %v1292 = vunpack.c.h.b16 %v877
    %v1293 = vunpack.c.l.b16 %v878
    %v1294 = vunpack.c.h.b16 %v878
    %v1295 = vunpack.c.l.b16 %v879
    %v1296 = vunpack.c.h.b16 %v879
    %v1297 = vunpack.c.l.b16 %v880
    %v1298 = vunpack.c.h.b16 %v880
    %v1299 = vunpack.c.l.b16 %v881
    %v1300 = vunpack.c.h.b16 %v881
    %v1301 = vunpack.c.l.b16 %v882
    %v1302 = vunpack.c.h.b16 %v882
    %v1303 = vunpack.c.l.b16 %v883
    %v1304 = vunpack.c.h.b16 %v883
    %v1305 = vunpack.c.l.b16 %v884
    %v1306 = vunpack.c.h.b16 %v884
    %v1307 = vunpack.c.l.b16 %v885
    %v1308 = vunpack.c.h.b16 %v885
    %v1309 = vunpack.c.l.b16 %v886
    %v1310 = vunpack.c.h.b16 %v886
    %v1311 = vunpack.c.l.b16 %v887
    %v1312 = vunpack.c.h.b16 %v887
    %v1313 = vunpack.c.l.b16 %v888
    %v1314 = vunpack.c.h.b16 %v888
    %v1315 = vunpack.c.l.b16 %v889
    %v1316 = vunpack.c.h.b16 %v889
    %v1317 = vunpack.c.l.b16 %v890
    %v1318 = vunpack.c.h.b16 %v890
    %v1319 = vunpack.c.l.b16 %v891
    %v1320 = vunpack.c.h.b16 %v891
    %v1321 = vunpack.c.l.b16 %v892
    %v1322 = vunpack.c.h.b16 %v892
    %v1323 = vunpack.c.l.b16 %v893
    %v1324 = vunpack.c.h.b16 %v893
    %v1325 = vunpack.c.l.b16 %v894
    %v1326 = vunpack.c.h.b16 %v894
    %v1327 = vunpack.c.l.b16 %v895
    %v1328 = vunpack.c.h.b16 %v895
    %v1329 = vunpack.c.l.b16 %v896
    %v1330 = vunpack.c.h.b16 %v896
    %v1331 = vunpack.c.l.b16 %v897
    %v1332 = vunpack.c.h.b16 %v897
    %v1333 = vunpack.c.l.b16 %v898
    %v1334 = vunpack.c.h.b16 %v898
    %v1335 = vunpack.c.l.b16 %v899
    %v1336 = vunpack.c.h.b16 %v899
    %v1337 = vunpack.c.l.b16 %v900
    %v1338 = vunpack.c.h.b16 %v900
    %v1339 = vunpack.c.l.b16 %v901
    %v1340 = vunpack.c.h.b16 %v901
    %v1341 = vunpack.c.l.b16 %v902
    %v1342 = vunpack.c.h.b16 %v902
    %v1343 = vunpack.c.l.b16 %v903
    %v1344 = vunpack.c.h.b16 %v903
    %v1345 = vunpack.c.l.b16 %v904
    %v1346 = vunpack.c.h.b16 %v904
    %v1347 = vunpack.c.l.b16 %v905
    %v1348 = vunpack.c.h.b16 %v905
    %v1349 = vunpack.c.l.b16 %v906
    %v1350 = vunpack.c.h.b16 %v906
    %v1351 = vunpack.c.l.b16 %v907
    %v1352 = vunpack.c.h.b16 %v907
    %v1353 = vunpack.c.l.b16 %v908
    %v1354 = vunpack.c.h.b16 %v908
    %v1355 = vunpack.c.l.b16 %v909
    %v1356 = vunpack.c.h.b16 %v909
    %v1357 = vunpack.c.l.b16 %v910
    %v1358 = vunpack.c.h.b16 %v910
    %v1359 = vunpack.c.l.b16 %v911
    %v1360 = vunpack.c.h.b16 %v911
    %v1361 = vunpack.c.l.b16 %v912
    %v1362 = vunpack.c.h.b16 %v912
    %v1363 = vunpack.c.l.b16 %v913
    %v1364 = vunpack.c.h.b16 %v913
    %v1365 = vunpack.c.l.b16 %v914
    %v1366 = vunpack.c.h.b16 %v914
    %v1367 = vunpack.c.l.b16 %v915
    %v1368 = vunpack.c.h.b16 %v915
    %v1369 = vunpack.c.l.b16 %v916
    %v1370 = vunpack.c.h.b16 %v916
    %v1371 = vunpack.c.l.b16 %v917
    %v1372 = vunpack.c.h.b16 %v917
    %v1373 = vunpack.c.l.b16 %v918
    %v1374 = vunpack.c.h.b16 %v918
    %v1375 = vunpack.c.l.b16 %v919
    %v1376 = vunpack.c.h.b16 %v919
    %v1377 = vunpack.c.l.b16 %v920
    %v1378 = vunpack.c.h.b16 %v920
    %v1379 = vunpack.c.l.b16 %v921
    %v1380 = vunpack.c.h.b16 %v921
    %v1381 = vunpack.c.l.b16 %v922
    %v1382 = vunpack.c.h.b16 %v922
    %v1383 = vunpack.c.l.b16 %v923
    %v1384 = vunpack.c.h.b16 %v923
    %v1385 = vunpack.c.l.b16 %v924
    %v1386 = vunpack.c.h.b16 %v924
    %v1387 = vunpack.c.l.b16 %v925
    %v1388 = vunpack.c.h.b16 %v925
    %v1389 = vunpack.c.l.b16 %v926
    %v1390 = vunpack.c.h.b16 %v926
    %v1391 = vunpack.c.l.b16 %v927
    %v1392 = vunpack.c.h.b16 %v927
    %v1393 = vunpack.c.l.b16 %v928
    %v1394 = vunpack.c.h.b16 %v928
    %v1395 = vunpack.c.l.b16 %v929
    %v1396 = vunpack.c.h.b16 %v929
    %v1397 = vunpack.c.l.b16 %v930
    %v1398 = vunpack.c.h.b16 %v930
    %v1399 = vunpack.c.l.b16 %v931
    %v1400 = vunpack.c.h.b16 %v931
    %v1401 = vunpack.c.l.b16 %v932
    %v1402 = vunpack.c.h.b16 %v932
    %v1403 = vunpack.c.l.b16 %v933
    %v1404 = vunpack.c.h.b16 %v933
    %v1405 = vunpack.c.l.b16 %v934
    %v1406 = vunpack.c.h.b16 %v934
    %v1407 = vunpack.c.l.b16 %v935
    %v1408 = vunpack.c.h.b16 %v935
    %v1409 = vunpack.c.l.b16 %v936
    %v1410 = vunpack.c.h.b16 %v936
    %v1411 = vunpack.c.l.b16 %v937
    %v1412 = vunpack.c.h.b16 %v937
    %v1413 = vunpack.c.l.b16 %v938
    %v1414 = vunpack.c.h.b16 %v938
    %v1415 = vunpack.c.l.b16 %v939
    %v1416 = vunpack.c.h.b16 %v939
    %v1417 = vunpack.c.l.b16 %v940
    %v1418 = vunpack.c.h.b16 %v940
    %v1419 = vunpack.c.l.b16 %v941
    %v1420 = vunpack.c.h.b16 %v941
    %v1421 = vunpack.c.l.b16 %v942
    %v1422 = vunpack.c.h.b16 %v942
    %v1423 = vunpack.c.l.b16 %v943
    %v1424 = vunpack.c.h.b16 %v943
    %v1425 = vunpack.c.l.b16 %v944
    %v1426 = vunpack.c.h.b16 %v944
    %v1427 = vunpack.c.l.b16 %v945
    %v1428 = vunpack.c.h.b16 %v945
    %v1429 = vunpack.c.l.b16 %v946
    %v1430 = vunpack.c.h.b16 %v946
    %v1431 = vunpack.c.l.b16 %v947
    %v1432 = vunpack.c.h.b16 %v947
    %v1433 = vunpack.c.l.b16 %v948
    %v1434 = vunpack.c.h.b16 %v948
    %v1435 = vunpack.c.l.b16 %v949
    %v1436 = vunpack.c.h.b16 %v949
    %v1437 = vunpack.c.l.b16 %v950
    %v1438 = vunpack.c.h.b16 %v950
    %v1439 = vunpack.c.l.b16 %v951
    %v1440 = vunpack.c.h.b16 %v951
    %v1441 = vunpack.c.l.b16 %v952
    %v1442 = vunpack.c.h.b16 %v952
    %v1443 = vunpack.c.l.b16 %v953
    %v1444 = vunpack.c.h.b16 %v953
    %v1445 = vunpack.c.l.b16 %v954
    %v1446 = vunpack.c.h.b16 %v954
    %v1447 = vunpack.c.l.b16 %v955
    %v1448 = vunpack.c.h.b16 %v955
    %v1449 = vunpack.c.l.b16 %v956
    %v1450 = vunpack.c.h.b16 %v956
    %v1451 = vunpack.c.l.b16 %v957
    %v1452 = vunpack.c.h.b16 %v957
    %v1453 = vunpack.c.l.b16 %v958
    %v1454 = vunpack.c.h.b16 %v958
    %v1455 = vunpack.c.l.b16 %v959
    %v1456 = vunpack.c.h.b16 %v959
    %v1457 = vunpack.c.l.b16 %v960
    %v1458 = vunpack.c.h.b16 %v960
    %v1459 = vunpack.c.l.b16 %v961
    %v1460 = vunpack.c.h.b16 %v961
    %v1461 = vunpack.c.l.b16 %v962
    %v1462 = vunpack.c.h.b16 %v962
    %v1463 = vunpack.c.l.b16 %v963
    %v1464 = vunpack.c.h.b16 %v963
    %v1465 = vunpack.c.l.b16 %v964
    %v1466 = vunpack.c.h.b16 %v964
    %v1467 = vunpack.c.l.b16 %v965
    %v1468 = vunpack.c.h.b16 %v965
    %v1469 = vunpack.c.l.b16 %v966
    %v1470 = vunpack.c.h.b16 %v966
    %v1471 = vunpack.c.l.b16 %v967
    %v1472 = vunpack.c.h.b16 %v967
    %v1473 = vunpack.c.l.b16 %v968
    %v1474 = vunpack.c.h.b16 %v968
    %v1475 = vunpack.c.l.b16 %v969
    %v1476 = vunpack.c.h.b16 %v969
    %v1477 = vunpack.c.l.b16 %v970
    %v1478 = vunpack.c.h.b16 %v970
    %v1479 = vunpack.c.l.b16 %v971
    %v1480 = vunpack.c.h.b16 %v971
    %v1481 = vunpack.c.l.b16 %v972
    %v1482 = vunpack.c.h.b16 %v972
    %v1483 = vunpack.c.l.b16 %v973
    %v1484 = vunpack.c.h.b16 %v973
    %v1485 = vunpack.c.l.b16 %v974
    %v1486 = vunpack.c.h.b16 %v974
    %v1487 = vunpack.c.l.b16 %v975
    %v1488 = vunpack.c.h.b16 %v975
    %v1489 = vunpack.c.l.b16 %v976
    %v1490 = vunpack.c.h.b16 %v976
    %v1491 = vunpack.c.l.b16 %v977
    %v1492 = vunpack.c.h.b16 %v977
    %v1493 = vunpack.c.l.b16 %v978
    %v1494 = vunpack.c.h.b16 %v978
    %v1495 = vunpack.c.l.b16 %v979
    %v1496 = vunpack.c.h.b16 %v979
    %v1497 = vunpack.c.l.b16 %v980
    %v1498 = vunpack.c.h.b16 %v980
    %v1499 = vunpack.c.l.b16 %v981
    %v1500 = vunpack.c.h.b16 %v981
    %v1501 = vunpack.c.l.b16 %v982
    %v1502 = vunpack.c.h.b16 %v982
    %v1503 = vunpack.c.l.b16 %v983
    %v1504 = vunpack.c.h.b16 %v983
    %v1505 = vunpack.c.l.b16 %v984
    %v1506 = vunpack.c.h.b16 %v984
    %v1507 = vunpack.c.l.b16 %v985
    %v1508 = vunpack.c.h.b16 %v985
    %v1509 = vunpack.c.l.b16 %v986
    %v1510 = vunpack.c.h.b16 %v986
    %v1511 = vunpack.c.l.b16 %v987
    %v1512 = vunpack.c.h.b16 %v987
    %v1513 = vunpack.c.l.b16 %v988
    %v1514 = vunpack.c.h.b16 %v988
    %v1515 = vunpack.c.l.b16 %v989
    %v1516 = vunpack.c.h.b16 %v989
    %v1517 = vunpack.c.l.b16 %v990
    %v1518 = vunpack.c.h.b16 %v990
    %v1519 = vunpack.c.l.b16 %v991
    %v1520 = vunpack.c.h.b16 %v991
    %v1521 = vunpack.c.l.b16 %v992
    %v1522 = vunpack.c.h.b16 %v992
    %v1523 = vunpack.c.l.b16 %v993
    %v1524 = vunpack.c.h.b16 %v993
    %v1525 = vunpack.c.l.b16 %v994
    %v1526 = vunpack.c.h.b16 %v994
    %v1527 = vunpack.c.l.b16 %v995
    %v1528 = vunpack.c.h.b16 %v995
    %v1529 = vunpack.c.l.b16 %v996
    %v1530 = vunpack.c.h.b16 %v996
    %v1531 = vunpack.c.l.b16 %v997
    %v1532 = vunpack.c.h.b16 %v997
    %v1533 = vunpack.c.l.b16 %v998
    %v1534 = vunpack.c.h.b16 %v998
    %v1535 = vunpack.c.l.b16 %v999
    %v1536 = vunpack.c.h.b16 %v999
    %v1537 = vunpack.c.l.b16 %v1000
    %v1538 = vunpack.c.h.b16 %v1000
    %v1539 = vunpack.c.l.b16 %v1001
    %v1540 = vunpack.c.h.b16 %v1001
    %v1541 = vunpack.c.l.b16 %v1002
    %v1542 = vunpack.c.h.b16 %v1002
    %v1543 = vunpack.c.l.b16 %v1003
    %v1544 = vunpack.c.h.b16 %v1003
    %v1545 = vunpack.c.l.b16 %v1004
    %v1546 = vunpack.c.h.b16 %v1004
    %v1547 = vunpack.c.l.b16 %v1005
    %v1548 = vunpack.c.h.b16 %v1005
    %v1549 = vunpack.c.l.b16 %v1006
    %v1550 = vunpack.c.h.b16 %v1006
    %v1551 = vunpack.c.l.b16 %v1007
    %v1552 = vunpack.c.h.b16 %v1007
    %v1553 = vunpack.c.l.b16 %v1008
    %v1554 = vunpack.c.h.b16 %v1008
    %v1555 = vunpack.c.l.b16 %v1009
    %v1556 = vunpack.c.h.b16 %v1009
    %v1557 = vunpack.c.l.b16 %v1010
    %v1558 = vunpack.c.h.b16 %v1010
    %v1559 = vunpack.c.l.b16 %v1011
    %v1560 = vunpack.c.h.b16 %v1011
    %v1561 = vunpack.c.l.b16 %v1012
    %v1562 = vunpack.c.h.b16 %v1012
    %v1563 = vunpack.c.l.b16 %v1013
    %v1564 = vunpack.c.h.b16 %v1013
    %v1565 = vunpack.c.l.b16 %v1014
    %v1566 = vunpack.c.h.b16 %v1014
    %v1567 = vunpack.c.l.b16 %v1015
    %v1568 = vunpack.c.h.b16 %v1015
    %v1569 = vunpack.c.l.b16 %v1016
    %v1570 = vunpack.c.h.b16 %v1016
    %v1571 = vunpack.c.l.b16 %v1017
    %v1572 = vunpack.c.h.b16 %v1017
    %v1573 = vunpack.c.l.b16 %v1018
    %v1574 = vunpack.c.h.b16 %v1018
    %v1575 = vunpack.c.l.b16 %v1019
    %v1576 = vunpack.c.h.b16 %v1019
    %v1577 = vunpack.c.l.b16 %v1020
    %v1578 = vunpack.c.h.b16 %v1020
    %v1579 = vunpack.c.l.b16 %v1021
    %v1580 = vunpack.c.h.b16 %v1021
    %v1581 = vunpack.c.l.b16 %v1022
    %v1582 = vunpack.c.h.b16 %v1022
    %v1583 = vunpack.c.l.b16 %v1023
    %v1584 = vunpack.c.h.b16 %v1023
    %v1585 = vunpack.c.l.b16 %v1024
    %v1586 = vunpack.c.h.b16 %v1024
    %v1587 = vunpack.c.l.b16 %v1025
    %v1588 = vunpack.c.h.b16 %v1025
    %v1589 = vunpack.c.l.b16 %v1026
    %v1590 = vunpack.c.h.b16 %v1026
    %v1591 = vunpack.c.l.b16 %v1027
    %v1592 = vunpack.c.h.b16 %v1027
    %v1593 = vunpack.c.l.b16 %v1028
    %v1594 = vunpack.c.h.b16 %v1028
    %v1595 = vunpack.c.l.b16 %v1029
    %v1596 = vunpack.c.h.b16 %v1029
    %v1597 = vunpack.c.l.b16 %v1030
    %v1598 = vunpack.c.h.b16 %v1030
    %v1599 = vunpack.c.l.b16 %v1031
    %v1600 = vunpack.c.h.b16 %v1031
    %v1601 = vunpack.c.l.b16 %v1032
    %v1602 = vunpack.c.h.b16 %v1032
    %v1603 = vunpack.c.l.b16 %v1033
    %v1604 = vunpack.c.h.b16 %v1033
    %v1605 = vunpack.c.l.b16 %v1034
    %v1606 = vunpack.c.h.b16 %v1034
    %v1607 = vunpack.c.l.b16 %v1035
    %v1608 = vunpack.c.h.b16 %v1035
    %v1609 = vunpack.c.l.b16 %v1036
    %v1610 = vunpack.c.h.b16 %v1036
    %v1611 = vunpack.c.l.b16 %v1037
    %v1612 = vunpack.c.h.b16 %v1037
    %v1613 = vunpack.c.l.b16 %v1038
    %v1614 = vunpack.c.h.b16 %v1038
    %v1615 = vpack.c.b16 %v1235, %v1231
    %v1616 = vpack.c.b16 %v1236, %v1232
    %v1617 = vpack.c.b16 %v1237, %v1233
    %v1618 = vpack.c.b16 %v1238, %v1234
    %v1619 = vpack.c.b16 %v1243, %v1239
    %v1620 = vpack.c.b16 %v1244, %v1240
    %v1621 = vpack.c.b16 %v1245, %v1241
    %v1622 = vpack.c.b16 %v1246, %v1242
    %v1623 = vpack.c.b16 %v1251, %v1247
    %v1624 = vpack.c.b16 %v1252, %v1248
    %v1625 = vpack.c.b16 %v1253, %v1249
    %v1626 = vpack.c.b16 %v1254, %v1250
    %v1627 = vpack.c.b16 %v1259, %v1255
    %v1628 = vpack.c.b16 %v1260, %v1256
    %v1629 = vpack.c.b16 %v1261, %v1257
    %v1630 = vpack.c.b16 %v1262, %v1258
    %v1631 = vpack.c.b16 %v1267, %v1263
    %v1632 = vpack.c.b16 %v1268, %v1264
    %v1633 = vpack.c.b16 %v1269, %v1265
    %v1634 = vpack.c.b16 %v1270, %v1266
    %v1635 = vpack.c.b16 %v1275, %v1271
    %v1636 = vpack.c.b16 %v1276, %v1272
    %v1637 = vpack.c.b16 %v1277, %v1273
    %v1638 = vpack.c.b16 %v1278, %v1274
    %v1639 = vpack.c.b16 %v1283, %v1279
    %v1640 = vpack.c.b16 %v1284, %v1280
    %v1641 = vpack.c.b16 %v1285, %v1281
    %v1642 = vpack.c.b16 %v1286, %v1282
    %v1643 = vpack.c.b16 %v1291, %v1287
    %v1644 = vpack.c.b16 %v1292, %v1288
    %v1645 = vpack.c.b16 %v1293, %v1289
    %v1646 = vpack.c.b16 %v1294, %v1290
    %v1647 = vpack.c.b16 %v1299, %v1295
    %v1648 = vpack.c.b16 %v1300, %v1296
    %v1649 = vpack.c.b16 %v1301, %v1297
    %v1650 = vpack.c.b16 %v1302, %v1298
    %v1651 = vpack.c.b16 %v1307, %v1303
    %v1652 = vpack.c.b16 %v1308, %v1304
    %v1653 = vpack.c.b16 %v1309, %v1305
    %v1654 = vpack.c.b16 %v1310, %v1306
    %v1655 = vpack.c.b16 %v1315, %v1311
    %v1656 = vpack.c.b16 %v1316, %v1312
    %v1657 = vpack.c.b16 %v1317, %v1313
    %v1658 = vpack.c.b16 %v1318, %v1314
    %v1659 = vpack.c.b16 %v1323, %v1319
    %v1660 = vpack.c.b16 %v1324, %v1320
    %v1661 = vpack.c.b16 %v1325, %v1321
    %v1662 = vpack.c.b16 %v1326, %v1322
    %v1663 = vpack.c.b16 %v1331, %v1327
    %v1664 = vpack.c.b16 %v1332, %v1328
    %v1665 = vpack.c.b16 %v1333, %v1329
    %v1666 = vpack.c.b16 %v1334, %v1330
    %v1667 = vpack.c.b16 %v1339, %v1335
    %v1668 = vpack.c.b16 %v1340, %v1336
    %v1669 = vpack.c.b16 %v1341, %v1337
    %v1670 = vpack.c.b16 %v1342, %v1338
    %v1671 = vpack.c.b16 %v1347, %v1343
    %v1672 = vpack.c.b16 %v1348, %v1344
    %v1673 = vpack.c.b16 %v1349, %v1345
    %v1674 = vpack.c.b16 %v1350, %v1346
    %v1675 = vpack.c.b16 %v1355, %v1351
    %v1676 = vpack.c.b16 %v1356, %v1352
    %v1677 = vpack.c.b16 %v1357, %v1353
    %v1678 = vpack.c.b16 %v1358, %v1354
    %v1679 = vpack.c.b16 %v1363, %v1359
    %v1680 = vpack.c.b16 %v1364, %v1360
    %v1681 = vpack.c.b16 %v1365, %v1361
    %v1682 = vpack.c.b16 %v1366, %v1362
    %v1683 = vpack.c.b16 %v1371, %v1367
    %v1684 = vpack.c.b16 %v1372, %v1368
    %v1685 = vpack.c.b16 %v1373, %v1369
    %v1686 = vpack.c.b16 %v1374, %v1370
    %v1687 = vpack.c.b16 %v1379, %v1375
    %v1688 = vpack.c.b16 %v1380, %v1376
    %v1689 = vpack.c.b16 %v1381, %v1377
    %v1690 = vpack.c.b16 %v1382, %v1378
    %v1691 = vpack.c.b16 %v1387, %v1383
    %v1692 = vpack.c.b16 %v1388, %v1384
    %v1693 = vpack.c.b16 %v1389, %v1385
    %v1694 = vpack.c.b16 %v1390, %v1386
    %v1695 = vpack.c.b16 %v1395, %v1391
    %v1696 = vpack.c.b16 %v1396, %v1392
    %v1697 = vpack.c.b16 %v1397, %v1393
    %v1698 = vpack.c.b16 %v1398, %v1394
    %v1699 = vpack.c.b16 %v1403, %v1399
    %v1700 = vpack.c.b16 %v1404, %v1400
    %v1701 = vpack.c.b16 %v1405, %v1401
    %v1702 = vpack.c.b16 %v1406, %v1402
    %v1703 = vpack.c.b16 %v1411, %v1407
    %v1704 = vpack.c.b16 %v1412, %v1408
    %v1705 = vpack.c.b16 %v1413, %v1409
    %v1706 = vpack.c.b16 %v1414, %v1410
    %v1707 = vpack.c.b16 %v1419, %v1415
    %v1708 = vpack.c.b16 %v1420, %v1416
    %v1709 = vpack.c.b16 %v1421, %v1417
    %v1710 = vpack.c.b16 %v1422, %v1418
    %v1711 = vpack.c.b16 %v1427, %v1423
    %v1712 = vpack.c.b16 %v1428, %v1424
    %v1713 = vpack.c.b16 %v1429, %v1425
    %v1714 = vpack.c.b16 %v1430, %v1426
    %v1715 = vpack.c.b16 %v1435, %v1431
    %v1716 = vpack.c.b16 %v1436, %v1432
    %v1717 = vpack.c.b16 %v1437, %v1433
    %v1718 = vpack.c.b16 %v1438, %v1434
    %v1719 = vpack.c.b16 %v1443, %v1439
    %v1720 = vpack.c.b16 %v1444, %v1440
    %v1721 = vpack.c.b16 %v1445, %v1441
    %v1722 = vpack.c.b16 %v1446, %v1442
    %v1723 = vpack.c.b16 %v1451, %v1447
    %v1724 = vpack.c.b16 %v1452, %v1448
    %v1725 = vpack.c.b16 %v1453, %v1449
    %v1726 = vpack.c.b16 %v1454, %v1450
    %v1727 = vpack.c.b16 %v1459, %v1455
    %v1728 = vpack.c.b16 %v1460, %v1456
    %v1729 = vpack.c.b16 %v1461, %v1457
    %v1730 = vpack.c.b16 %v1462, %v1458
    %v1731 = vpack.c.b16 %v1467, %v1463
    %v1732 = vpack.c.b16 %v1468, %v1464
    %v1733 = vpack.c.b16 %v1469, %v1465
    %v1734 = vpack.c.b16 %v1470, %v1466
    %v1735 = vpack.c.b16 %v1475, %v1471
    %v1736 = vpack.c.b16 %v1476, %v1472
    %v1737 = vpack.c.b16 %v1477, %v1473
    %v1738 = vpack.c.b16 %v1478, %v1474
    %v1739 = vpack.c.b16 %v1483, %v1479
    %v1740 = vpack.c.b16 %v1484, %v1480
    %v1741 = vpack.c.b16 %v1485, %v1481
    %v1742 = vpack.c.b16 %v1486, %v1482
    %v1743 = vpack.c.b16 %v1491, %v1487
    %v1744 = vpack.c.b16 %v1492, %v1488
    %v1745 = vpack.c.b16 %v1493, %v1489
    %v1746 = vpack.c.b16 %v1494, %v1490
    %v1747 = vpack.c.b16 %v1499, %v1495
    %v1748 = vpack.c.b16 %v1500, %v1496
    %v1749 = vpack.c.b16 %v1501, %v1497
    %v1750 = vpack.c.b16 %v1502, %v1498
    %v1751 = vpack.c.b16 %v1507, %v1503
    %v1752 = vpack.c.b16 %v1508, %v1504
    %v1753 = vpack.c.b16 %v1509, %v1505
    %v1754 = vpack.c.b16 %v1510, %v1506
    %v1755 = vpack.c.b16 %v1515, %v1511
    %v1756 = vpack.c.b16 %v1516, %v1512
    %v1757 = vpack.c.b16 %v1517, %v1513
    %v1758 = vpack.c.b16 %v1518, %v1514
    %v1759 = vpack.c.b16 %v1523, %v1519
    %v1760 = vpack.c.b16 %v1524, %v1520
    %v1761 = vpack.c.b16 %v1525, %v1521
    %v1762 = vpack.c.b16 %v1526, %v1522
    %v1763 = vpack.c.b16 %v1531, %v1527
    %v1764 = vpack.c.b16 %v1532, %v1528
    %v1765 = vpack.c.b16 %v1533, %v1529
    %v1766 = vpack.c.b16 %v1534, %v1530
    %v1767 = vpack.c.b16 %v1539, %v1535
    %v1768 = vpack.c.b16 %v1540, %v1536
    %v1769 = vpack.c.b16 %v1541, %v1537
    %v1770 = vpack.c.b16 %v1542, %v1538
    %v1771 = vpack.c.b16 %v1547, %v1543
    %v1772 = vpack.c.b16 %v1548, %v1544
    %v1773 = vpack.c.b16 %v1549, %v1545
    %v1774 = vpack.c.b16 %v1550, %v1546
    %v1775 = vpack.c.b16 %v1555, %v1551
    %v1776 = vpack.c.b16 %v1556, %v1552
    %v1777 = vpack.c.b16 %v1557, %v1553
    %v1778 = vpack.c.b16 %v1558, %v1554
    %v1779 = vpack.c.b16 %v1563, %v1559
    %v1780 = vpack.c.b16 %v1564, %v1560
    %v1781 = vpack.c.b16 %v1565, %v1561
    %v1782 = vpack.c.b16 %v1566, %v1562
    %v1783 = vpack.c.b16 %v1571, %v1567
    %v1784 = vpack.c.b16 %v1572, %v1568
    %v1785 = vpack.c.b16 %v1573, %v1569
    %v1786 = vpack.c.b16 %v1574, %v1570
    %v1787 = vpack.c.b16 %v1579, %v1575
    %v1788 = vpack.c.b16 %v1580, %v1576
    %v1789 = vpack.c.b16 %v1581, %v1577
    %v1790 = vpack.c.b16 %v1582, %v1578
    %v1791 = vpack.c.b16 %v1587, %v1583
    %v1792 = vpack.c.b16 %v1588, %v1584
    %v1793 = vpack.c.b16 %v1589, %v1585
    %v1794 = vpack.c.b16 %v1590, %v1586
    %v1795 = vpack.c.b16 %v1595, %v1591
    %v1796 = vpack.c.b16 %v1596, %v1592
    %v1797 = vpack.c.b16 %v1597, %v1593
    %v1798 = vpack.c.b16 %v1598, %v1594
    %v1799 = vpack.c.b16 %v1603, %v1599
    %v1800 = vpack.c.b16 %v1604, %v1600
    %v1801 = vpack.c.b16 %v1605, %v1601
    %v1802 = vpack.c.b16 %v1606, %v1602
    %v1803 = vpack.c.b16 %v1611, %v1607
    %v1804 = vpack.c.b16 %v1612, %v1608
    %v1805 = vpack.c.b16 %v1613, %v1609
    %v1806 = vpack.c.b16 %v1614, %v1610
    %1999 = vmatpush.bf16.msra.mxu0 %v1643
    %2000 = vmatpush.bf16.msra.mxu0 %v1639
    %2001 = vmatpush.bf16.msra.mxu0 %v1635
    %2002 = vmatpush.bf16.msra.mxu0 %v1631
    %2003 = vmatpush.bf16.msra.mxu0 %v1627
    %2004 = vmatpush.bf16.msra.mxu0 %v1623
    %2005 = vmatpush.bf16.msra.mxu0 %v1619
    %2006 = vmatpush.bf16.msra.mxu0 %v1615
    %2007 = vmatmul.bf16.gmra.mxu0 %v809
    %v2008 = vpop.f32.mrf.mxu0
    %v2009 = vadd.f32 0.0, %v2008
    %v2010 = vpop.f32.mrf.mxu0
    %v2011 = vadd.f32 0.0, %v2010
    %2012 = vmatmul.bf16.gmra.mxu0 %v825
    %v2013 = vpop.f32.mrf.mxu0
    %v2014 = vadd.f32 0.0, %v2013
    %v2015 = vpop.f32.mrf.mxu0
    %v2016 = vadd.f32 0.0, %v2015
    %2017 = vdwg.mxu0
    %2018 = vmatpush.bf16.msra.mxu0 %v1675
    %2019 = vmatpush.bf16.msra.mxu0 %v1671
    %2020 = vmatpush.bf16.msra.mxu0 %v1667
    %2021 = vmatpush.bf16.msra.mxu0 %v1663
    %2022 = vmatpush.bf16.msra.mxu0 %v1659
    %2023 = vmatpush.bf16.msra.mxu0 %v1655
    %2024 = vmatpush.bf16.msra.mxu0 %v1651
    %2025 = vmatpush.bf16.msra.mxu0 %v1647
    %2026 = vmatmul.bf16.gmra.mxu0 %v813
    %v2027 = vpop.f32.mrf.mxu0
    %v2028 = vadd.f32 %v2009, %v2027
    %v2029 = vpop.f32.mrf.mxu0
    %v2030 = vadd.f32 %v2011, %v2029
    %2031 = vmatmul.bf16.gmra.mxu0 %v829
    %v2032 = vpop.f32.mrf.mxu0
    %v2033 = vadd.f32 %v2014, %v2032
    %v2034 = vpop.f32.mrf.mxu0
    %v2035 = vadd.f32 %v2016, %v2034
    %2036 = vdwg.mxu0
    %2037 = vmatpush.bf16.msra.mxu0 %v1707
    %2038 = vmatpush.bf16.msra.mxu0 %v1703
    %2039 = vmatpush.bf16.msra.mxu0 %v1699
    %2040 = vmatpush.bf16.msra.mxu0 %v1695
    %2041 = vmatpush.bf16.msra.mxu0 %v1691
    %2042 = vmatpush.bf16.msra.mxu0 %v1687
    %2043 = vmatpush.bf16.msra.mxu0 %v1683
    %2044 = vmatpush.bf16.msra.mxu0 %v1679
    %2045 = vmatmul.bf16.gmra.mxu0 %v817
    %v2046 = vpop.f32.mrf.mxu0
    %v2047 = vadd.f32 %v2028, %v2046
    %v2048 = vpop.f32.mrf.mxu0
    %v2049 = vadd.f32 %v2030, %v2048
    %2050 = vmatmul.bf16.gmra.mxu0 %v833
    %v2051 = vpop.f32.mrf.mxu0
    %v2052 = vadd.f32 %v2033, %v2051
    %v2053 = vpop.f32.mrf.mxu0
    %v2054 = vadd.f32 %v2035, %v2053
    %2055 = vdwg.mxu0
    %2056 = vmatpush.bf16.msra.mxu0 %v1739
    %2057 = vmatpush.bf16.msra.mxu0 %v1735
    %2058 = vmatpush.bf16.msra.mxu0 %v1731
    %2059 = vmatpush.bf16.msra.mxu0 %v1727
    %2060 = vmatpush.bf16.msra.mxu0 %v1723
    %2061 = vmatpush.bf16.msra.mxu0 %v1719
    %2062 = vmatpush.bf16.msra.mxu0 %v1715
    %2063 = vmatpush.bf16.msra.mxu0 %v1711
    %2064 = vmatmul.bf16.gmra.mxu0 %v821
    %v2065 = vpop.f32.mrf.mxu0
    %v2066 = vadd.f32 %v2047, %v2065
    %v2067 = vpop.f32.mrf.mxu0
    %v2068 = vadd.f32 %v2049, %v2067
    %2069 = vmatmul.bf16.gmra.mxu0 %v837
    %v2070 = vpop.f32.mrf.mxu0
    %v2071 = vadd.f32 %v2052, %v2070
    %v2072 = vpop.f32.mrf.mxu0
    %v2073 = vadd.f32 %v2054, %v2072
    %2074 = vdwg.mxu0
    %2075 = vmatpush.bf16.msra.mxu0 %v1771
    %2076 = vmatpush.bf16.msra.mxu0 %v1767
    %2077 = vmatpush.bf16.msra.mxu0 %v1763
    %2078 = vmatpush.bf16.msra.mxu0 %v1759
    %2079 = vmatpush.bf16.msra.mxu0 %v1755
    %2080 = vmatpush.bf16.msra.mxu0 %v1751
    %2081 = vmatpush.bf16.msra.mxu0 %v1747
    %2082 = vmatpush.bf16.msra.mxu0 %v1743
    %2083 = vmatmul.bf16.gmra.mxu0 %v825
    %v2084 = vpop.f32.mrf.mxu0
    %v2085 = vadd.f32 %v2066, %v2084
    %v2086 = vpop.f32.mrf.mxu0
    %v2087 = vadd.f32 %v2068, %v2086
    %2088 = vmatmul.bf16.gmra.mxu0 %v841
    %v2089 = vpop.f32.mrf.mxu0
    %v2090 = vadd.f32 %v2071, %v2089
    %v2091 = vpop.f32.mrf.mxu0
    %v2092 = vadd.f32 %v2073, %v2091
    %2093 = vdwg.mxu0
    %2094 = vmatpush.bf16.msra.mxu0 %v1803
    %2095 = vmatpush.bf16.msra.mxu0 %v1799
    %2096 = vmatpush.bf16.msra.mxu0 %v1795
    %2097 = vmatpush.bf16.msra.mxu0 %v1791
    %2098 = vmatpush.bf16.msra.mxu0 %v1787
    %2099 = vmatpush.bf16.msra.mxu0 %v1783
    %2100 = vmatpush.bf16.msra.mxu0 %v1779
    %2101 = vmatpush.bf16.msra.mxu0 %v1775
    %2102 = vmatmul.bf16.gmra.mxu0 %v829
    %v2103 = vpop.f32.mrf.mxu0
    %v2104 = vadd.f32 %v2085, %v2103
    %v2105 = vpop.f32.mrf.mxu0
    %v2106 = vadd.f32 %v2087, %v2105
    %2107 = vmatmul.bf16.gmra.mxu0 %v845
    %v2108 = vpop.f32.mrf.mxu0
    %v2109 = vadd.f32 %v2090, %v2108
    %v2110 = vpop.f32.mrf.mxu0
    %v2111 = vadd.f32 %v2092, %v2110
    %2112 = vdwg.mxu0
    %2113 = vmatpush.bf16.msra.mxu0 %v1644
    %2114 = vmatpush.bf16.msra.mxu0 %v1640
    %2115 = vmatpush.bf16.msra.mxu0 %v1636
    %2116 = vmatpush.bf16.msra.mxu0 %v1632
    %2117 = vmatpush.bf16.msra.mxu0 %v1628
    %2118 = vmatpush.bf16.msra.mxu0 %v1624
    %2119 = vmatpush.bf16.msra.mxu0 %v1620
    %2120 = vmatpush.bf16.msra.mxu0 %v1616
    %2121 = vmatmul.bf16.gmra.mxu0 %v809
    %v2122 = vpop.f32.mrf.mxu0
    %v2123 = vadd.f32 0.0, %v2122
    %v2124 = vpop.f32.mrf.mxu0
    %v2125 = vadd.f32 0.0, %v2124
    %2126 = vmatmul.bf16.gmra.mxu0 %v825
    %v2127 = vpop.f32.mrf.mxu0
    %v2128 = vadd.f32 0.0, %v2127
    %v2129 = vpop.f32.mrf.mxu0
    %v2130 = vadd.f32 0.0, %v2129
    %2131 = vdwg.mxu0
    %2132 = vmatpush.bf16.msra.mxu0 %v1676
    %2133 = vmatpush.bf16.msra.mxu0 %v1672
    %2134 = vmatpush.bf16.msra.mxu0 %v1668
    %2135 = vmatpush.bf16.msra.mxu0 %v1664
    %2136 = vmatpush.bf16.msra.mxu0 %v1660
    %2137 = vmatpush.bf16.msra.mxu0 %v1656
    %2138 = vmatpush.bf16.msra.mxu0 %v1652
    %2139 = vmatpush.bf16.msra.mxu0 %v1648
    %2140 = vmatmul.bf16.gmra.mxu0 %v813
    %v2141 = vpop.f32.mrf.mxu0
    %v2142 = vadd.f32 %v2123, %v2141
    %v2143 = vpop.f32.mrf.mxu0
    %v2144 = vadd.f32 %v2125, %v2143
    %2145 = vmatmul.bf16.gmra.mxu0 %v829
    %v2146 = vpop.f32.mrf.mxu0
    %v2147 = vadd.f32 %v2128, %v2146
    %v2148 = vpop.f32.mrf.mxu0
    %v2149 = vadd.f32 %v2130, %v2148
    %2150 = vdwg.mxu0
    %2151 = vmatpush.bf16.msra.mxu0 %v1708
    %2152 = vmatpush.bf16.msra.mxu0 %v1704
    %2153 = vmatpush.bf16.msra.mxu0 %v1700
    %2154 = vmatpush.bf16.msra.mxu0 %v1696
    %2155 = vmatpush.bf16.msra.mxu0 %v1692
    %2156 = vmatpush.bf16.msra.mxu0 %v1688
    %2157 = vmatpush.bf16.msra.mxu0 %v1684
    %2158 = vmatpush.bf16.msra.mxu0 %v1680
    %2159 = vmatmul.bf16.gmra.mxu0 %v817
    %v2160 = vpop.f32.mrf.mxu0
    %v2161 = vadd.f32 %v2142, %v2160
    %v2162 = vpop.f32.mrf.mxu0
    %v2163 = vadd.f32 %v2144, %v2162
    %2164 = vmatmul.bf16.gmra.mxu0 %v833
    %v2165 = vpop.f32.mrf.mxu0
    %v2166 = vadd.f32 %v2147, %v2165
    %v2167 = vpop.f32.mrf.mxu0
    %v2168 = vadd.f32 %v2149, %v2167
    %2169 = vdwg.mxu0
    %2170 = vmatpush.bf16.msra.mxu0 %v1740
    %2171 = vmatpush.bf16.msra.mxu0 %v1736
    %2172 = vmatpush.bf16.msra.mxu0 %v1732
    %2173 = vmatpush.bf16.msra.mxu0 %v1728
    %2174 = vmatpush.bf16.msra.mxu0 %v1724
    %2175 = vmatpush.bf16.msra.mxu0 %v1720
    %2176 = vmatpush.bf16.msra.mxu0 %v1716
    %2177 = vmatpush.bf16.msra.mxu0 %v1712
    %2178 = vmatmul.bf16.gmra.mxu0 %v821
    %v2179 = vpop.f32.mrf.mxu0
    %v2180 = vadd.f32 %v2161, %v2179
    %v2181 = vpop.f32.mrf.mxu0
    %v2182 = vadd.f32 %v2163, %v2181
    %2183 = vmatmul.bf16.gmra.mxu0 %v837
    %v2184 = vpop.f32.mrf.mxu0
    %v2185 = vadd.f32 %v2166, %v2184
    %v2186 = vpop.f32.mrf.mxu0
    %v2187 = vadd.f32 %v2168, %v2186
    %2188 = vdwg.mxu0
    %2189 = vmatpush.bf16.msra.mxu0 %v1772
    %2190 = vmatpush.bf16.msra.mxu0 %v1768
    %2191 = vmatpush.bf16.msra.mxu0 %v1764
    %2192 = vmatpush.bf16.msra.mxu0 %v1760
    %2193 = vmatpush.bf16.msra.mxu0 %v1756
    %2194 = vmatpush.bf16.msra.mxu0 %v1752
    %2195 = vmatpush.bf16.msra.mxu0 %v1748
    %2196 = vmatpush.bf16.msra.mxu0 %v1744
    %2197 = vmatmul.bf16.gmra.mxu0 %v825
    %v2198 = vpop.f32.mrf.mxu0
    %v2199 = vadd.f32 %v2180, %v2198
    %v2200 = vpop.f32.mrf.mxu0
    %v2201 = vadd.f32 %v2182, %v2200
    %2202 = vmatmul.bf16.gmra.mxu0 %v841
    %v2203 = vpop.f32.mrf.mxu0
    %v2204 = vadd.f32 %v2185, %v2203
    %v2205 = vpop.f32.mrf.mxu0
    %v2206 = vadd.f32 %v2187, %v2205
    %2207 = vdwg.mxu0
    %2208 = vmatpush.bf16.msra.mxu0 %v1804
    %2209 = vmatpush.bf16.msra.mxu0 %v1800
    %2210 = vmatpush.bf16.msra.mxu0 %v1796
    %2211 = vmatpush.bf16.msra.mxu0 %v1792
    %2212 = vmatpush.bf16.msra.mxu0 %v1788
    %2213 = vmatpush.bf16.msra.mxu0 %v1784
    %2214 = vmatpush.bf16.msra.mxu0 %v1780
    %2215 = vmatpush.bf16.msra.mxu0 %v1776
    %2216 = vmatmul.bf16.gmra.mxu0 %v829
    %v2217 = vpop.f32.mrf.mxu0
    %v2218 = vadd.f32 %v2199, %v2217
    %v2219 = vpop.f32.mrf.mxu0
    %v2220 = vadd.f32 %v2201, %v2219
    %2221 = vmatmul.bf16.gmra.mxu0 %v845
    %v2222 = vpop.f32.mrf.mxu0
    %v2223 = vadd.f32 %v2204, %v2222
    %v2224 = vpop.f32.mrf.mxu0
    %v2225 = vadd.f32 %v2206, %v2224
    %2226 = vdwg.mxu0
    %2227 = vmatpush.bf16.msra.mxu0 %v1645
    %2228 = vmatpush.bf16.msra.mxu0 %v1641
    %2229 = vmatpush.bf16.msra.mxu0 %v1637
    %2230 = vmatpush.bf16.msra.mxu0 %v1633
    %2231 = vmatpush.bf16.msra.mxu0 %v1629
    %2232 = vmatpush.bf16.msra.mxu0 %v1625
    %2233 = vmatpush.bf16.msra.mxu0 %v1621
    %2234 = vmatpush.bf16.msra.mxu0 %v1617
    %2235 = vmatmul.bf16.gmra.mxu0 %v809
    %v2236 = vpop.f32.mrf.mxu0
    %v2237 = vadd.f32 0.0, %v2236
    %v2238 = vpop.f32.mrf.mxu0
    %v2239 = vadd.f32 0.0, %v2238
    %2240 = vmatmul.bf16.gmra.mxu0 %v825
    %v2241 = vpop.f32.mrf.mxu0
    %v2242 = vadd.f32 0.0, %v2241
    %v2243 = vpop.f32.mrf.mxu0
    %v2244 = vadd.f32 0.0, %v2243
    %2245 = vdwg.mxu0
    %2246 = vmatpush.bf16.msra.mxu0 %v1677
    %2247 = vmatpush.bf16.msra.mxu0 %v1673
    %2248 = vmatpush.bf16.msra.mxu0 %v1669
    %2249 = vmatpush.bf16.msra.mxu0 %v1665
    %2250 = vmatpush.bf16.msra.mxu0 %v1661
    %2251 = vmatpush.bf16.msra.mxu0 %v1657
    %2252 = vmatpush.bf16.msra.mxu0 %v1653
    %2253 = vmatpush.bf16.msra.mxu0 %v1649
    %2254 = vmatmul.bf16.gmra.mxu0 %v813
    %v2255 = vpop.f32.mrf.mxu0
    %v2256 = vadd.f32 %v2237, %v2255
    %v2257 = vpop.f32.mrf.mxu0
    %v2258 = vadd.f32 %v2239, %v2257
    %2259 = vmatmul.bf16.gmra.mxu0 %v829
    %v2260 = vpop.f32.mrf.mxu0
    %v2261 = vadd.f32 %v2242, %v2260
    %v2262 = vpop.f32.mrf.mxu0
    %v2263 = vadd.f32 %v2244, %v2262
    %2264 = vdwg.mxu0
    %2265 = vmatpush.bf16.msra.mxu0 %v1709
    %2266 = vmatpush.bf16.msra.mxu0 %v1705
    %2267 = vmatpush.bf16.msra.mxu0 %v1701
    %2268 = vmatpush.bf16.msra.mxu0 %v1697
    %2269 = vmatpush.bf16.msra.mxu0 %v1693
    %2270 = vmatpush.bf16.msra.mxu0 %v1689
    %2271 = vmatpush.bf16.msra.mxu0 %v1685
    %2272 = vmatpush.bf16.msra.mxu0 %v1681
    %2273 = vmatmul.bf16.gmra.mxu0 %v817
    %v2274 = vpop.f32.mrf.mxu0
    %v2275 = vadd.f32 %v2256, %v2274
    %v2276 = vpop.f32.mrf.mxu0
    %v2277 = vadd.f32 %v2258, %v2276
    %2278 = vmatmul.bf16.gmra.mxu0 %v833
    %v2279 = vpop.f32.mrf.mxu0
    %v2280 = vadd.f32 %v2261, %v2279
    %v2281 = vpop.f32.mrf.mxu0
    %v2282 = vadd.f32 %v2263, %v2281
    %2283 = vdwg.mxu0
    %2284 = vmatpush.bf16.msra.mxu0 %v1741
    %2285 = vmatpush.bf16.msra.mxu0 %v1737
    %2286 = vmatpush.bf16.msra.mxu0 %v1733
    %2287 = vmatpush.bf16.msra.mxu0 %v1729
    %2288 = vmatpush.bf16.msra.mxu0 %v1725
    %2289 = vmatpush.bf16.msra.mxu0 %v1721
    %2290 = vmatpush.bf16.msra.mxu0 %v1717
    %2291 = vmatpush.bf16.msra.mxu0 %v1713
    %2292 = vmatmul.bf16.gmra.mxu0 %v821
    %v2293 = vpop.f32.mrf.mxu0
    %v2294 = vadd.f32 %v2275, %v2293
    %v2295 = vpop.f32.mrf.mxu0
    %v2296 = vadd.f32 %v2277, %v2295
    %2297 = vmatmul.bf16.gmra.mxu0 %v837
    %v2298 = vpop.f32.mrf.mxu0
    %v2299 = vadd.f32 %v2280, %v2298
    %v2300 = vpop.f32.mrf.mxu0
    %v2301 = vadd.f32 %v2282, %v2300
    %2302 = vdwg.mxu0
    %2303 = vmatpush.bf16.msra.mxu0 %v1773
    %2304 = vmatpush.bf16.msra.mxu0 %v1769
    %2305 = vmatpush.bf16.msra.mxu0 %v1765
    %2306 = vmatpush.bf16.msra.mxu0 %v1761
    %2307 = vmatpush.bf16.msra.mxu0 %v1757
    %2308 = vmatpush.bf16.msra.mxu0 %v1753
    %2309 = vmatpush.bf16.msra.mxu0 %v1749
    %2310 = vmatpush.bf16.msra.mxu0 %v1745
    %2311 = vmatmul.bf16.gmra.mxu0 %v825
    %v2312 = vpop.f32.mrf.mxu0
    %v2313 = vadd.f32 %v2294, %v2312
    %v2314 = vpop.f32.mrf.mxu0
    %v2315 = vadd.f32 %v2296, %v2314
    %2316 = vmatmul.bf16.gmra.mxu0 %v841
    %v2317 = vpop.f32.mrf.mxu0
    %v2318 = vadd.f32 %v2299, %v2317
    %v2319 = vpop.f32.mrf.mxu0
    %v2320 = vadd.f32 %v2301, %v2319
    %2321 = vdwg.mxu0
    %2322 = vmatpush.bf16.msra.mxu0 %v1805
    %2323 = vmatpush.bf16.msra.mxu0 %v1801
    %2324 = vmatpush.bf16.msra.mxu0 %v1797
    %2325 = vmatpush.bf16.msra.mxu0 %v1793
    %2326 = vmatpush.bf16.msra.mxu0 %v1789
    %2327 = vmatpush.bf16.msra.mxu0 %v1785
    %2328 = vmatpush.bf16.msra.mxu0 %v1781
    %2329 = vmatpush.bf16.msra.mxu0 %v1777
    %2330 = vmatmul.bf16.gmra.mxu0 %v829
    %v2331 = vpop.f32.mrf.mxu0
    %v2332 = vadd.f32 %v2313, %v2331
    %v2333 = vpop.f32.mrf.mxu0
    %v2334 = vadd.f32 %v2315, %v2333
    %2335 = vmatmul.bf16.gmra.mxu0 %v845
    %v2336 = vpop.f32.mrf.mxu0
    %v2337 = vadd.f32 %v2318, %v2336
    %v2338 = vpop.f32.mrf.mxu0
    %v2339 = vadd.f32 %v2320, %v2338
    %2340 = vdwg.mxu0
    %2341 = vmatpush.bf16.msra.mxu0 %v1646
    %2342 = vmatpush.bf16.msra.mxu0 %v1642
    %2343 = vmatpush.bf16.msra.mxu0 %v1638
    %2344 = vmatpush.bf16.msra.mxu0 %v1634
    %2345 = vmatpush.bf16.msra.mxu0 %v1630
    %2346 = vmatpush.bf16.msra.mxu0 %v1626
    %2347 = vmatpush.bf16.msra.mxu0 %v1622
    %2348 = vmatpush.bf16.msra.mxu0 %v1618
    %2349 = vmatmul.bf16.gmra.mxu0 %v809
    %v2350 = vpop.f32.mrf.mxu0
    %v2351 = vadd.f32 0.0, %v2350
    %v2352 = vpop.f32.mrf.mxu0
    %v2353 = vadd.f32 0.0, %v2352
    %2354 = vmatmul.bf16.gmra.mxu0 %v825
    %v2355 = vpop.f32.mrf.mxu0
    %v2356 = vadd.f32 0.0, %v2355
    %v2357 = vpop.f32.mrf.mxu0
    %v2358 = vadd.f32 0.0, %v2357
    %2359 = vdwg.mxu0
    %2360 = vmatpush.bf16.msra.mxu0 %v1678
    %2361 = vmatpush.bf16.msra.mxu0 %v1674
    %2362 = vmatpush.bf16.msra.mxu0 %v1670
    %2363 = vmatpush.bf16.msra.mxu0 %v1666
    %2364 = vmatpush.bf16.msra.mxu0 %v1662
    %2365 = vmatpush.bf16.msra.mxu0 %v1658
    %2366 = vmatpush.bf16.msra.mxu0 %v1654
    %2367 = vmatpush.bf16.msra.mxu0 %v1650
    %2368 = vmatmul.bf16.gmra.mxu0 %v813
    %v2369 = vpop.f32.mrf.mxu0
    %v2370 = vadd.f32 %v2351, %v2369
    %v2371 = vpop.f32.mrf.mxu0
    %v2372 = vadd.f32 %v2353, %v2371
    %2373 = vmatmul.bf16.gmra.mxu0 %v829
    %v2374 = vpop.f32.mrf.mxu0
    %v2375 = vadd.f32 %v2356, %v2374
    %v2376 = vpop.f32.mrf.mxu0
    %v2377 = vadd.f32 %v2358, %v2376
    %2378 = vdwg.mxu0
    %2379 = vmatpush.bf16.msra.mxu0 %v1710
    %2380 = vmatpush.bf16.msra.mxu0 %v1706
    %2381 = vmatpush.bf16.msra.mxu0 %v1702
    %2382 = vmatpush.bf16.msra.mxu0 %v1698
    %2383 = vmatpush.bf16.msra.mxu0 %v1694
    %2384 = vmatpush.bf16.msra.mxu0 %v1690
    %2385 = vmatpush.bf16.msra.mxu0 %v1686
    %2386 = vmatpush.bf16.msra.mxu0 %v1682
    %2387 = vmatmul.bf16.gmra.mxu0 %v817
    %v2388 = vpop.f32.mrf.mxu0
    %v2389 = vadd.f32 %v2370, %v2388
    %v2390 = vpop.f32.mrf.mxu0
    %v2391 = vadd.f32 %v2372, %v2390
    %2392 = vmatmul.bf16.gmra.mxu0 %v833
    %v2393 = vpop.f32.mrf.mxu0
    %v2394 = vadd.f32 %v2375, %v2393
    %v2395 = vpop.f32.mrf.mxu0
    %v2396 = vadd.f32 %v2377, %v2395
    %2397 = vdwg.mxu0
    %2398 = vmatpush.bf16.msra.mxu0 %v1742
    %2399 = vmatpush.bf16.msra.mxu0 %v1738
    %2400 = vmatpush.bf16.msra.mxu0 %v1734
    %2401 = vmatpush.bf16.msra.mxu0 %v1730
    %2402 = vmatpush.bf16.msra.mxu0 %v1726
    %2403 = vmatpush.bf16.msra.mxu0 %v1722
    %2404 = vmatpush.bf16.msra.mxu0 %v1718
    %2405 = vmatpush.bf16.msra.mxu0 %v1714
    %2406 = vmatmul.bf16.gmra.mxu0 %v821
    %v2407 = vpop.f32.mrf.mxu0
    %v2408 = vadd.f32 %v2389, %v2407
    %v2409 = vpop.f32.mrf.mxu0
    %v2410 = vadd.f32 %v2391, %v2409
    %2411 = vmatmul.bf16.gmra.mxu0 %v837
    %v2412 = vpop.f32.mrf.mxu0
    %v2413 = vadd.f32 %v2394, %v2412
    %v2414 = vpop.f32.mrf.mxu0
    %v2415 = vadd.f32 %v2396, %v2414
    %2416 = vdwg.mxu0
    %2417 = vmatpush.bf16.msra.mxu0 %v1774
    %2418 = vmatpush.bf16.msra.mxu0 %v1770
    %2419 = vmatpush.bf16.msra.mxu0 %v1766
    %2420 = vmatpush.bf16.msra.mxu0 %v1762
    %2421 = vmatpush.bf16.msra.mxu0 %v1758
    %2422 = vmatpush.bf16.msra.mxu0 %v1754
    %2423 = vmatpush.bf16.msra.mxu0 %v1750
    %2424 = vmatpush.bf16.msra.mxu0 %v1746
    %2425 = vmatmul.bf16.gmra.mxu0 %v825
    %v2426 = vpop.f32.mrf.mxu0
    %v2427 = vadd.f32 %v2408, %v2426
    %v2428 = vpop.f32.mrf.mxu0
    %v2429 = vadd.f32 %v2410, %v2428
    %2430 = vmatmul.bf16.gmra.mxu0 %v841
    %v2431 = vpop.f32.mrf.mxu0
    %v2432 = vadd.f32 %v2413, %v2431
    %v2433 = vpop.f32.mrf.mxu0
    %v2434 = vadd.f32 %v2415, %v2433
    %2435 = vdwg.mxu0
    %2436 = vmatpush.bf16.msra.mxu0 %v1806
    %2437 = vmatpush.bf16.msra.mxu0 %v1802
    %2438 = vmatpush.bf16.msra.mxu0 %v1798
    %2439 = vmatpush.bf16.msra.mxu0 %v1794
    %2440 = vmatpush.bf16.msra.mxu0 %v1790
    %2441 = vmatpush.bf16.msra.mxu0 %v1786
    %2442 = vmatpush.bf16.msra.mxu0 %v1782
    %2443 = vmatpush.bf16.msra.mxu0 %v1778
    %2444 = vmatmul.bf16.gmra.mxu0 %v829
    %v2445 = vpop.f32.mrf.mxu0
    %v2446 = vadd.f32 %v2427, %v2445
    %v2447 = vpop.f32.mrf.mxu0
    %v2448 = vadd.f32 %v2429, %v2447
    %2449 = vmatmul.bf16.gmra.mxu0 %v845
    %v2450 = vpop.f32.mrf.mxu0
    %v2451 = vadd.f32 %v2432, %v2450
    %v2452 = vpop.f32.mrf.mxu0
    %v2453 = vadd.f32 %v2434, %v2452
    %2454 = vdwg.mxu0
    %v2455 = vmax.f32 %v2104, %v2332
    %v2456 = vmax.f32 %v2218, %v2446
    %v2457 = vmax.f32 %v2106, %v2334
    %v2458 = vmax.f32 %v2220, %v2448
    %v2459 = vmax.f32 %v2109, %v2337
    %v2460 = vmax.f32 %v2223, %v2451
    %v2461 = vmax.f32 %v2111, %v2339
    %v2462 = vmax.f32 %v2225, %v2453
    %v2463 = vmax.f32 %v2455, %v2456
    %v2464 = vmax.f32 %v2457, %v2458
    %v2465 = vmax.f32 %v2459, %v2460
    %v2466 = vmax.f32 %v2461, %v2462
    %v2467 = vld [vmem:[%s4] sm:$0x1]
    %v2469 = vperm.slane %v2467, 0
    %v2471 = vadd.f32 %v2463, %v2469
    %v2472 = vadd.f32 %v2464, %v2469
    %v2473 = vadd.f32 %v2465, %v2469
    %v2474 = vadd.f32 %v2466, %v2469
    %v2475 = vmax.f32 %v2471, 0.0
    %v2476 = vmax.f32 %v2472, 0.0
    %v2477 = vmax.f32 %v2473, 0.0
    %v2478 = vmax.f32 %v2474, 0.0
    %v2479 = vpack.c.bf16 %v2475, %v2475
    %v2480 = vpack.c.bf16 %v2476, %v2476
    %v2481 = vpack.c.bf16 %v2477, %v2477
    %v2482 = vpack.c.bf16 %v2478, %v2478
    %v2483 = vld [vmem:[%s5] sm:$0xf]
    %v2484 = vld [vmem:[%s5 + $0x4] sm:$0xf]
    %v2485 = vld [vmem:[%s5 + $0x8] sm:$0xf]
    %v2486 = vld [vmem:[%s5 + $0xc] sm:$0xf]
    %v2487 = vld [vmem:[%s5 + $0x10] sm:$0xf]
    %v2488 = vld [vmem:[%s5 + $0x14] sm:$0xf]
    %v2489 = vld [vmem:[%s5 + $0x18] sm:$0xf]
    %v2490 = vld [vmem:[%s5 + $0x1c] sm:$0xf]
    %v2491 = vld [vmem:[%s5 + $0x20] sm:$0xf]
    %v2492 = vld [vmem:[%s5 + $0x24] sm:$0xf]
    %v2493 = vld [vmem:[%s5 + $0x28] sm:$0xf]
    %v2494 = vld [vmem:[%s5 + $0x2c] sm:$0xf]
    %v2495 = vld [vmem:[%s5 + $0x30] sm:$0xf]
    %v2496 = vld [vmem:[%s5 + $0x34] sm:$0xf]
    %v2497 = vld [vmem:[%s5 + $0x38] sm:$0xf]
    %v2498 = vld [vmem:[%s5 + $0x3c] sm:$0xf]
    %v2499 = vld [vmem:[%s5 + $0x40] sm:$0xf]
    %v2500 = vld [vmem:[%s5 + $0x44] sm:$0xf]
    %v2501 = vld [vmem:[%s5 + $0x48] sm:$0xf]
    %v2502 = vld [vmem:[%s5 + $0x4c] sm:$0xf]
    %v2503 = vld [vmem:[%s5 + $0x50] sm:$0xf]
    %v2504 = vld [vmem:[%s5 + $0x54] sm:$0xf]
    %v2505 = vld [vmem:[%s5 + $0x58] sm:$0xf]
    %v2506 = vld [vmem:[%s5 + $0x5c] sm:$0xf]
    %v2507 = vld [vmem:[%s5 + $0x60] sm:$0xf]
    %v2508 = vld [vmem:[%s5 + $0x64] sm:$0xf]
    %v2509 = vld [vmem:[%s5 + $0x68] sm:$0xf]
    %v2510 = vld [vmem:[%s5 + $0x6c] sm:$0xf]
    %v2511 = vld [vmem:[%s5 + $0x70] sm:$0xf]
    %v2512 = vld [vmem:[%s5 + $0x74] sm:$0xf]
    %v2513 = vld [vmem:[%s5 + $0x78] sm:$0xf]
    %v2514 = vld [vmem:[%s5 + $0x7c] sm:$0xf]
    %v2515 = vld [vmem:[%s5 + $0x80] sm:$0xf]
    %v2516 = vld [vmem:[%s5 + $0x84] sm:$0xf]
    %v2517 = vld [vmem:[%s5 + $0x88] sm:$0xf]
    %v2518 = vld [vmem:[%s5 + $0x8c] sm:$0xf]
    %v2519 = vld [vmem:[%s5 + $0x90] sm:$0xf]
    %v2520 = vld [vmem:[%s5 + $0x94] sm:$0xf]
    %v2521 = vld [vmem:[%s5 + $0x98] sm:$0xf]
    %v2522 = vld [vmem:[%s5 + $0x9c] sm:$0xf]
    %v2523 = vld [vmem:[%s5 + $0xa0] sm:$0xf]
    %v2524 = vld [vmem:[%s5 + $0xa4] sm:$0xf]
    %v2525 = vld [vmem:[%s5 + $0xa8] sm:$0xf]
    %v2526 = vld [vmem:[%s5 + $0xac] sm:$0xf]
    %v2527 = vld [vmem:[%s5 + $0xb0] sm:$0xf]
    %v2528 = vld [vmem:[%s5 + $0xb4] sm:$0xf]
    %v2529 = vld [vmem:[%s5 + $0xb8] sm:$0xf]
    %v2530 = vld [vmem:[%s5 + $0xbc] sm:$0xf]
    %v2531 = vld [vmem:[%s5 + $0xc0] sm:$0xf]
    %v2532 = vld [vmem:[%s5 + $0xc4] sm:$0xf]
    %v2533 = vld [vmem:[%s5 + $0xc8] sm:$0xf]
    %v2534 = vld [vmem:[%s5 + $0xcc] sm:$0xf]
    %v2535 = vld [vmem:[%s5 + $0xd0] sm:$0xf]
    %v2536 = vld [vmem:[%s5 + $0xd4] sm:$0xf]
    %v2537 = vld [vmem:[%s5 + $0xd8] sm:$0xf]
    %v2538 = vld [vmem:[%s5 + $0xdc] sm:$0xf]
    %v2539 = vld [vmem:[%s5 + $0xe0] sm:$0xf]
    %v2540 = vld [vmem:[%s5 + $0xe4] sm:$0xf]
    %v2541 = vld [vmem:[%s5 + $0xe8] sm:$0xf]
    %v2542 = vld [vmem:[%s5 + $0xec] sm:$0xf]
    %v2543 = vld [vmem:[%s5 + $0xf0] sm:$0xf]
    %v2544 = vld [vmem:[%s5 + $0xf4] sm:$0xf]
    %v2545 = vld [vmem:[%s5 + $0xf8] sm:$0xf]
    %v2546 = vld [vmem:[%s5 + $0xfc] sm:$0xf]
    %v2547 = vld [vmem:[%s6] sm:$0x1]
    %v2549 = vperm.slane %v2547, 0
    %v2615 = vunpack.c.l.b16 %v2483
    %v2616 = vunpack.c.l.b16 %v2484
    %v2617 = vunpack.c.l.b16 %v2485
    %v2618 = vunpack.c.l.b16 %v2486
    %v2619 = vunpack.c.l.b16 %v2487
    %v2620 = vunpack.c.l.b16 %v2488
    %v2621 = vunpack.c.l.b16 %v2489
    %v2622 = vunpack.c.l.b16 %v2490
    %v2623 = vunpack.c.l.b16 %v2491
    %v2624 = vunpack.c.l.b16 %v2492
    %v2625 = vunpack.c.l.b16 %v2493
    %v2626 = vunpack.c.l.b16 %v2494
    %v2627 = vunpack.c.l.b16 %v2495
    %v2628 = vunpack.c.l.b16 %v2496
    %v2629 = vunpack.c.l.b16 %v2497
    %v2630 = vunpack.c.l.b16 %v2498
    %v2631 = vunpack.c.l.b16 %v2499
    %v2632 = vunpack.c.l.b16 %v2500
    %v2633 = vunpack.c.l.b16 %v2501
    %v2634 = vunpack.c.l.b16 %v2502
    %v2635 = vunpack.c.l.b16 %v2503
    %v2636 = vunpack.c.l.b16 %v2504
    %v2637 = vunpack.c.l.b16 %v2505
    %v2638 = vunpack.c.l.b16 %v2506
    %v2639 = vunpack.c.l.b16 %v2507
    %v2640 = vunpack.c.l.b16 %v2508
    %v2641 = vunpack.c.l.b16 %v2509
    %v2642 = vunpack.c.l.b16 %v2510
    %v2643 = vunpack.c.l.b16 %v2511
    %v2644 = vunpack.c.l.b16 %v2512
    %v2645 = vunpack.c.l.b16 %v2513
    %v2646 = vunpack.c.l.b16 %v2514
    %v2647 = vunpack.c.l.b16 %v2515
    %v2648 = vunpack.c.l.b16 %v2516
    %v2649 = vunpack.c.l.b16 %v2517
    %v2650 = vunpack.c.l.b16 %v2518
    %v2651 = vunpack.c.l.b16 %v2519
    %v2652 = vunpack.c.l.b16 %v2520
    %v2653 = vunpack.c.l.b16 %v2521
    %v2654 = vunpack.c.l.b16 %v2522
    %v2655 = vunpack.c.l.b16 %v2523
    %v2656 = vunpack.c.l.b16 %v2524
    %v2657 = vunpack.c.l.b16 %v2525
    %v2658 = vunpack.c.l.b16 %v2526
    %v2659 = vunpack.c.l.b16 %v2527
    %v2660 = vunpack.c.l.b16 %v2528
    %v2661 = vunpack.c.l.b16 %v2529
    %v2662 = vunpack.c.l.b16 %v2530
    %v2663 = vunpack.c.l.b16 %v2531
    %v2664 = vunpack.c.l.b16 %v2532
    %v2665 = vunpack.c.l.b16 %v2533
    %v2666 = vunpack.c.l.b16 %v2534
    %v2667 = vunpack.c.l.b16 %v2535
    %v2668 = vunpack.c.l.b16 %v2536
    %v2669 = vunpack.c.l.b16 %v2537
    %v2670 = vunpack.c.l.b16 %v2538
    %v2671 = vunpack.c.l.b16 %v2539
    %v2672 = vunpack.c.l.b16 %v2540
    %v2673 = vunpack.c.l.b16 %v2541
    %v2674 = vunpack.c.l.b16 %v2542
    %v2675 = vunpack.c.l.b16 %v2543
    %v2676 = vunpack.c.l.b16 %v2544
    %v2677 = vunpack.c.l.b16 %v2545
    %v2678 = vunpack.c.l.b16 %v2546
    %v2679 = vpack.c.b16 %v2616, %v2615
    %v2680 = vpack.c.b16 %v2618, %v2617
    %v2681 = vpack.c.b16 %v2620, %v2619
    %v2682 = vpack.c.b16 %v2622, %v2621
    %v2683 = vpack.c.b16 %v2624, %v2623
    %v2684 = vpack.c.b16 %v2626, %v2625
    %v2685 = vpack.c.b16 %v2628, %v2627
    %v2686 = vpack.c.b16 %v2630, %v2629
    %v2687 = vpack.c.b16 %v2632, %v2631
    %v2688 = vpack.c.b16 %v2634, %v2633
    %v2689 = vpack.c.b16 %v2636, %v2635
    %v2690 = vpack.c.b16 %v2638, %v2637
    %v2691 = vpack.c.b16 %v2640, %v2639
    %v2692 = vpack.c.b16 %v2642, %v2641
    %v2693 = vpack.c.b16 %v2644, %v2643
    %v2694 = vpack.c.b16 %v2646, %v2645
    %v2695 = vpack.c.b16 %v2648, %v2647
    %v2696 = vpack.c.b16 %v2650, %v2649
    %v2697 = vpack.c.b16 %v2652, %v2651
    %v2698 = vpack.c.b16 %v2654, %v2653
    %v2699 = vpack.c.b16 %v2656, %v2655
    %v2700 = vpack.c.b16 %v2658, %v2657
    %v2701 = vpack.c.b16 %v2660, %v2659
    %v2702 = vpack.c.b16 %v2662, %v2661
    %v2703 = vpack.c.b16 %v2664, %v2663
    %v2704 = vpack.c.b16 %v2666, %v2665
    %v2705 = vpack.c.b16 %v2668, %v2667
    %v2706 = vpack.c.b16 %v2670, %v2669
    %v2707 = vpack.c.b16 %v2672, %v2671
    %v2708 = vpack.c.b16 %v2674, %v2673
    %v2709 = vpack.c.b16 %v2676, %v2675
    %v2710 = vpack.c.b16 %v2678, %v2677
    %2743 = vmatpush.bf16.msra.mxu0 %v2686
    %2744 = vmatpush.bf16.msra.mxu0 %v2685
    %2745 = vmatpush.bf16.msra.mxu0 %v2684
    %2746 = vmatpush.bf16.msra.mxu0 %v2683
    %2747 = vmatpush.bf16.msra.mxu0 %v2682
    %2748 = vmatpush.bf16.msra.mxu0 %v2681
    %2749 = vmatpush.bf16.msra.mxu0 %v2680
    %2750 = vmatpush.bf16.msra.mxu0 %v2679
    %2751 = vmatmul.bf16.gmra.mxu0 %v2479
    %v2752 = vpop.f32.mrf.mxu0
    %v2753 = vadd.f32 %v2549, %v2752
    %v2754 = vpop.f32.mrf.mxu0
    %2755 = vdwg.mxu0
    %2756 = vmatpush.bf16.msra.mxu0 %v2694
    %2757 = vmatpush.bf16.msra.mxu0 %v2693
    %2758 = vmatpush.bf16.msra.mxu0 %v2692
    %2759 = vmatpush.bf16.msra.mxu0 %v2691
    %2760 = vmatpush.bf16.msra.mxu0 %v2690
    %2761 = vmatpush.bf16.msra.mxu0 %v2689
    %2762 = vmatpush.bf16.msra.mxu0 %v2688
    %2763 = vmatpush.bf16.msra.mxu0 %v2687
    %2764 = vmatmul.bf16.gmra.mxu0 %v2480
    %v2765 = vpop.f32.mrf.mxu0
    %v2766 = vadd.f32 %v2753, %v2765
    %v2767 = vpop.f32.mrf.mxu0
    %2768 = vdwg.mxu0
    %2769 = vmatpush.bf16.msra.mxu0 %v2702
    %2770 = vmatpush.bf16.msra.mxu0 %v2701
    %2771 = vmatpush.bf16.msra.mxu0 %v2700
    %2772 = vmatpush.bf16.msra.mxu0 %v2699
    %2773 = vmatpush.bf16.msra.mxu0 %v2698
    %2774 = vmatpush.bf16.msra.mxu0 %v2697
    %2775 = vmatpush.bf16.msra.mxu0 %v2696
    %2776 = vmatpush.bf16.msra.mxu0 %v2695
    %2777 = vmatmul.bf16.gmra.mxu0 %v2481
    %v2778 = vpop.f32.mrf.mxu0
    %v2779 = vadd.f32 %v2766, %v2778
    %v2780 = vpop.f32.mrf.mxu0
    %2781 = vdwg.mxu0
    %2782 = vmatpush.bf16.msra.mxu0 %v2710
    %2783 = vmatpush.bf16.msra.mxu0 %v2709
    %2784 = vmatpush.bf16.msra.mxu0 %v2708
    %2785 = vmatpush.bf16.msra.mxu0 %v2707
    %2786 = vmatpush.bf16.msra.mxu0 %v2706
    %2787 = vmatpush.bf16.msra.mxu0 %v2705
    %2788 = vmatpush.bf16.msra.mxu0 %v2704
    %2789 = vmatpush.bf16.msra.mxu0 %v2703
    %2790 = vmatmul.bf16.gmra.mxu0 %v2482
    %v2791 = vpop.f32.mrf.mxu0
    %v2792 = vadd.f32 %v2779, %v2791
    %v2793 = vpop.f32.mrf.mxu0
    %2794 = vdwg.mxu0
    %v2795 = vmax.f32 %v2792, 0.0
    %v2796 = vpack.c.bf16 %v2795, %v2795
    %v2797 = vld [vmem:[%s7] sm:$0xf]
    %v2798 = vld [vmem:[%s7 + $0x4] sm:$0xf]
    %v2799 = vld [vmem:[%s7 + $0x8] sm:$0xf]
    %v2800 = vld [vmem:[%s7 + $0xc] sm:$0xf]
    %v2801 = vld [vmem:[%s7 + $0x10] sm:$0xf]
    %v2802 = vld [vmem:[%s7 + $0x14] sm:$0xf]
    %v2803 = vld [vmem:[%s7 + $0x18] sm:$0x1]
    %v2804 = vld [vmem:[%s8] sm:$0x1]
    %v2806 = vperm.slane %v2804, 0
    %v2815 = vunpack.c.l.b16 %v2797
    %v2816 = vunpack.c.l.b16 %v2798
    %v2817 = vunpack.c.l.b16 %v2799
    %v2818 = vunpack.c.l.b16 %v2800
    %v2819 = vunpack.c.l.b16 %v2801
    %v2820 = vunpack.c.l.b16 %v2802
    %v2821 = vunpack.c.l.b16 %v2803
    %v2822 = vpack.c.b16 %v2816, %v2815
    %v2823 = vpack.c.b16 %v2818, %v2817
    %v2824 = vpack.c.b16 %v2820, %v2819
    %v2825 = vpack.c.b16 %v2821, %v2821
    %vm2829 = vcmask 408576
    %v2831 = vsel %vm2829, %v2796, 0
    %vm2833 = vcmask 1040384
    %v2835 = vsel %vm2833, %v2825, 0
    %2837 = vmatpush.bf16.msra.mxu0 0
    %2838 = vmatpush.bf16.msra.mxu0 0
    %2839 = vmatpush.bf16.msra.mxu0 0
    %2840 = vmatpush.bf16.msra.mxu0 0
    %2841 = vmatpush.bf16.msra.mxu0 %v2835
    %2842 = vmatpush.bf16.msra.mxu0 %v2824
    %2843 = vmatpush.bf16.msra.mxu0 %v2823
    %2844 = vmatpush.bf16.msra.mxu0 %v2822
    %2845 = vmatmul.bf16.gmra.mxu0 %v2831
    %v2846 = vpop.f32.mrf.mxu0
    %v2847 = vadd.f32 %v2806, %v2846
    %v2848 = vpop.f32.mrf.mxu0
    %2849 = vdwg.mxu0
    %vm2850 = vcmask 80896
    %2851 = vst.msk [vmem:[%s9] sm:$0xff] %vm2850, %v2847
    // Predicated region
    $region42: #{cnn_forward.1} parent=1 // pred_check
      _
    $region43: #{cnn_forward.1} parent=1 // pred_check_branch
      %2853 = sbr.rel (0) target = $region45
    $region44: #{cnn_forward.1} parent=1 // pred_region
      _
    $region45: #{cnn_forward.1} parent=1 // pred_fallthru
      _
    // Predicated region
    $region46: #{cnn_forward.1} parent=1 // pred_check
      _
    $region47: #{cnn_forward.1} parent=1 // pred_check_branch
      %2855 = sbr.rel (0) target = $region49
    $region48: #{cnn_forward.1} parent=1 // pred_region
      _
    $region49: #{cnn_forward.1} parent=1 // pred_fallthru
      _
    %2856 = vsyncpa [#allocation3], 1

</llo_original>
